<compile_context>
chip_gen: v7x
topology: tpu7x:2x2x1
jax: 0.10.0
libtpu: 0.0.40
codegen_flags: <defaults>
</compile_context>

<pallas_src>
import jax
import jax.numpy as jnp
from jax.experimental import pallas as pl
from jax.experimental.pallas import tpu as pltpu

HIDDEN = 32
INPUT_SIZE = 1
NUM_CLASSES = 4
NUM_LAYERS = 2
OUT_LANES = 128          # lane-dense FC output (sliced back to NUM_CLASSES outside)


def _lstm_kernel(maxlen_ref, x_ref, wih0_ref, b0_ref, wbig_ref, b1_ref,
                 fcw_ref, fcb_ref, len_ref, out_ref, xw0_scr):
    T, Bp, _ = x_ref.shape
    H = HIDDEN
    G = 4 * H                                   # 128 lanes -> one f32 vreg

    # ---- off-critical-path precompute --------------------------------------
    # Layer-0 input projection + bias for every timestep in one broadcast
    # multiply-add (replaces a per-step K=1 MXU matmul on the serial chain).
    xw0_scr[...] = x_ref[...] * wih0_ref[...] + b0_ref[...]      # (T, Bp, 4H)

    # ---- hoist loop invariants ---------------------------------------------
    wbig = wbig_ref[...]            # (2H, 8H)  fused [gates1 | rec0(t+1)] weight
    b1 = b1_ref[...]                # (1, 4H)
    lm1 = len_ref[...] - 1          # (Bp, 1)   capture index, hoisted

    # Lane-masked constants for the single-full-vreg-tanh sigmoid trick.
    # PyTorch gate order along lanes: i, f, g, o.
    lane = jax.lax.broadcasted_iota(jnp.int32, (Bp, G), 1)
    is_g = (lane >= 2 * H) & (lane < 3 * H)
    pre = jnp.where(is_g, 1.0, 0.5).astype(jnp.float32)   # tanh input scale
    post_a = pre                                           # output scale
    post_b = jnp.where(is_g, 0.0, 0.5).astype(jnp.float32)  # output shift

    def cell(gates, c):
        # sigmoid(z) = 0.5*tanh(0.5*z)+0.5 exactly; g lanes keep plain tanh.
        # ONE full-vreg EUP tanh for all four gates instead of 4 slice ops.
        act = jnp.tanh(gates * pre) * post_a + post_b
        i = act[:, 0 * H:1 * H]
        f = act[:, 1 * H:2 * H]
        g = act[:, 2 * H:3 * H]
        o = act[:, 3 * H:4 * H]
        c_new = f * c + i * g
        h_new = o * jnp.tanh(c_new)
        return h_new, c_new

    def step(t, carry):
        c0, h1, c1, rec0, last = carry
        # layer 0: input term precomputed; recurrent term rec0 = h0(t-1)@whh0.T
        # was produced by the PREVIOUS step's fused matmul (wavefront skew).
        h0n, c0n = cell(xw0_scr[t] + rec0, c0)
        # ONE fused matmul per step:
        #   cols [0,4H)  -> gates1(t) pre-bias   (h0n@wih1.T + h1@whh1.T)
        #   cols [4H,8H) -> recurrent part of gates0(t+1)   (h0n@whh0.T)
        hcat = jnp.concatenate([h0n, h1], axis=1)                # (Bp, 2H)
        fused = jnp.dot(hcat, wbig, preferred_element_type=jnp.float32)
        h1n, c1n = cell(fused[:, :G] + b1, c1)
        rec0n = fused[:, G:]
        # capture top-layer hidden state at t == lengths[b] - 1
        last = jnp.where(lm1 == t, h1n, last)
        return (c0n, h1n, c1n, rec0n, last)

    zeros_h = jnp.zeros((Bp, H), jnp.float32)
    zeros_g = jnp.zeros((Bp, G), jnp.float32)
    carry = (zeros_h, zeros_h, zeros_h, zeros_g, zeros_h)

    if T <= 32:
        # Full unroll with static indices (T is a trace-time constant) so the
        # scheduler can overlap adjacent timesteps' matmul->EUP chains.
        for t in range(T):
            carry = step(t, carry)
    else:
        # Bound the serial loop at max(lengths): steps past the longest real
        # sequence are pure waste.  Body is already skewed to one matmul.
        carry = jax.lax.fori_loop(0, maxlen_ref[0], step, carry)
    last_h = carry[4]

    # fc(last_outputs); dropout on last_outputs is identity in eval mode.
    # fcw/fcb are zero-padded to 128 lanes -> lane-dense matmul + unmasked vst.
    out_ref[...] = (jnp.dot(last_h, fcw_ref[...],
                            preferred_element_type=jnp.float32)
                    + fcb_ref[...])


def lstm_model_forward(x, lengths, params):
    """x: (B, T, input_size) float32 (batch-first, like PyTorch),
       lengths: (B,) int32, returns logits (B, num_classes)."""
    B, T, _ = x.shape
    H = HIDDEN
    C = NUM_CLASSES
    Bp = max(8, ((B + 7) // 8) * 8)          # pad batch to f32 sublane multiple

    x_p = jnp.zeros((Bp, T, INPUT_SIZE), jnp.float32).at[:B].set(
        x.astype(jnp.float32))
    x_tm = jnp.transpose(x_p, (1, 0, 2))     # (T, Bp, input_size) time-major
    len_p = jnp.zeros((Bp,), jnp.int32).at[:B].set(lengths.astype(jnp.int32))
    len2d = len_p.reshape(Bp, 1)             # padded rows: len=0 -> never captured
    max_len = jnp.max(len_p).reshape(1)      # SMEM scalar loop bound (T>32 path)

    (wih0, whh0, bih0, bhh0,
     wih1, whh1, bih1, bhh1,
     fcw, fcb) = params

    # Fused block RHS for the skewed per-step matmul:
    #   [h0(t) | h1(t-1)] @ [[wih1.T, whh0.T], [whh1.T, 0]]  -> (Bp, 8H)
    w_top = jnp.concatenate([wih1.T, whh0.T], axis=1)             # (H, 8H)
    w_bot = jnp.concatenate([whh1.T, jnp.zeros((H, 4 * H), jnp.float32)],
                            axis=1)                               # (H, 8H)
    wbig = jnp.concatenate([w_top, w_bot], axis=0)                # (2H, 8H)

    # Lane-dense FC epilogue: pad classes to 128 lanes, slice outside.
    fcw_p = jnp.zeros((H, OUT_LANES), jnp.float32).at[:, :C].set(fcw.T)
    fcb_p = jnp.zeros((1, OUT_LANES), jnp.float32).at[:, :C].set(
        fcb.reshape(1, C))

    args = (
        max_len,                              # (1,) int32  -> SMEM
        x_tm,                                 # (T, Bp, 1)
        wih0.T,                               # (1, 4H)
        (bih0 + bhh0).reshape(1, 4 * H),      # (1, 4H)
        wbig,                                 # (2H, 8H)
        (bih1 + bhh1).reshape(1, 4 * H),      # (1, 4H)
        fcw_p,                                # (H, 128)
        fcb_p,                                # (1, 128)
        len2d,                                # (Bp, 1) int32
    )

    smem = pl.BlockSpec(memory_space=pltpu.MemorySpace.SMEM)
    vmem = pl.BlockSpec(memory_space=pltpu.MemorySpace.VMEM)
    out = pl.pallas_call(
        _lstm_kernel,
        out_shape=jax.ShapeDtypeStruct((Bp, OUT_LANES), jnp.float32),
        in_specs=[smem] + [vmem] * (len(args) - 1),
        out_specs=vmem,
        scratch_shapes=[pltpu.VMEM((T, Bp, 4 * H), jnp.float32)],
    )(*args)
    return out[:B, :C]


def init_params(key):
    """Deterministic parameter init matching PyTorch LSTM/Linear shapes."""
    H = HIDDEN
    scale = 1.0 / jnp.sqrt(jnp.float32(H))
    ks = jax.random.split(key, 10)
    u = lambda k, shape: jax.random.uniform(k, shape, jnp.float32, -scale, scale)
    wih0 = u(ks[0], (4 * H, INPUT_SIZE))
    whh0 = u(ks[1], (4 * H, H))
    bih0 = u(ks[2], (4 * H,))
    bhh0 = u(ks[3], (4 * H,))
    wih1 = u(ks[4], (4 * H, H))
    whh1 = u(ks[5], (4 * H, H))
    bih1 = u(ks[6], (4 * H,))
    bhh1 = u(ks[7], (4 * H,))
    fcw = u(ks[8], (NUM_CLASSES, H))
    fcb = u(ks[9], (NUM_CLASSES,))
    return (wih0, whh0, bih0, bhh0, wih1, whh1, bih1, bhh1, fcw, fcb)


def lstm_model_reference(x, lengths, params):
    """Pure-JAX reference (same math as the PyTorch module in eval mode)."""
    H = HIDDEN
    (wih0, whh0, bih0, bhh0, wih1, whh1, bih1, bhh1, fcw, fcb) = params
    B, T, _ = x.shape

    def cell(x_t, h, c, wih, whh, b):
        g = x_t @ wih.T + h @ whh.T + b
        i = jax.nn.sigmoid(g[:, :H])
        f = jax.nn.sigmoid(g[:, H:2 * H])
        gg = jnp.tanh(g[:, 2 * H:3 * H])
        o = jax.nn.sigmoid(g[:, 3 * H:])
        c = f * c + i * gg
        h = o * jnp.tanh(c)
        return h, c

    h0 = c0 = h1 = c1 = jnp.zeros((B, H), jnp.float32)
    last = jnp.zeros((B, H), jnp.float32)
    for t in range(T):
        x_t = x[:, t, :]
        h0, c0 = cell(x_t, h0, c0, wih0, whh0, bih0 + bhh0)
        h1, c1 = cell(h0, h1, c1, wih1, whh1, bih1 + bhh1)
        mask = (lengths - 1)[:, None] == t
        last = jnp.where(mask, h1, last)
    return last @ fcw.T + fcb[None, :]


if __name__ == "__main__":
    B, T = 2, 8
    key = jax.random.PRNGKey(0)
    kx, kp = jax.random.split(key)

    params = init_params(kp)

    lengths = jnp.array([8, 5], dtype=jnp.int32)
    x = jax.random.normal(kx, (B, T, INPUT_SIZE), jnp.float32)
    # zero out the padded tail (mimics padded-sequence input)
    t_idx = jnp.arange(T)[None, :, None]
    x = jnp.where(t_idx < lengths[:, None, None], x, 0.0)

    out = lstm_model_forward(x, lengths, params)
    out = jax.block_until_ready(out)

    ref = lstm_model_reference(x, lengths, params)
    assert out.shape == (B, NUM_CLASSES)
    assert jnp.allclose(out, ref, atol=1e-5, rtol=1e-5), (out, ref)

    print("KERNEL_OK")
</pallas_src>

<mosaic_0001>
module attributes {stable_mosaic.version = 11 : i64} {
  func.func @_lstm_kernel(%arg0: memref<1xi32, #tpu.memory_space<smem>>, %arg1: memref<8x8x1xf32, #tpu.memory_space<vmem>>, %arg2: memref<1x128xf32, #tpu.memory_space<vmem>>, %arg3: memref<1x128xf32, #tpu.memory_space<vmem>>, %arg4: memref<64x256xf32, #tpu.memory_space<vmem>>, %arg5: memref<1x128xf32, #tpu.memory_space<vmem>>, %arg6: memref<32x128xf32, #tpu.memory_space<vmem>>, %arg7: memref<1x128xf32, #tpu.memory_space<vmem>>, %arg8: memref<8x1xi32, #tpu.memory_space<vmem>>, %arg9: memref<8x128xf32, #tpu.memory_space<vmem>>, %arg10: memref<8x8x128xf32, #tpu.memory_space<vmem>>) attributes {dimension_semantics = [], scalar_prefetch = 0 : i64, scratch_operands = 1 : i64, tpu.core_type = #tpu.core_type<tc>} {
    %c0 = arith.constant 0 : index
    %c0_0 = arith.constant 0 : index
    %c0_1 = arith.constant 0 : index
    %0 = vector.load %arg1[%c0, %c0_0, %c0_1] : memref<8x8x1xf32, #tpu.memory_space<vmem>>, vector<8x8x1xf32>
    %c0_2 = arith.constant 0 : index
    %c0_3 = arith.constant 0 : index
    %1 = vector.load %arg2[%c0_2, %c0_3] : memref<1x128xf32, #tpu.memory_space<vmem>>, vector<1x128xf32>
    %2 = vector.shape_cast %1 : vector<1x128xf32> to vector<1x1x128xf32>
    %3 = vector.broadcast %0 : vector<8x8x1xf32> to vector<8x8x128xf32>
    %4 = vector.broadcast %2 : vector<1x1x128xf32> to vector<8x8x128xf32>
    %5 = arith.mulf %3, %4 : vector<8x8x128xf32>
    %c0_4 = arith.constant 0 : index
    %c0_5 = arith.constant 0 : index
    %6 = vector.load %arg3[%c0_4, %c0_5] : memref<1x128xf32, #tpu.memory_space<vmem>>, vector<1x128xf32>
    %7 = vector.shape_cast %6 : vector<1x128xf32> to vector<1x1x128xf32>
    %8 = vector.broadcast %7 : vector<1x1x128xf32> to vector<8x8x128xf32>
    %9 = arith.addf %5, %8 : vector<8x8x128xf32>
    %c0_6 = arith.constant 0 : index
    %c0_7 = arith.constant 0 : index
    %c0_8 = arith.constant 0 : index
    %10 = vector.load %arg10[%c0_6, %c0_7, %c0_8] : memref<8x8x128xf32, #tpu.memory_space<vmem>>, vector<8x8x128xf32>
    tpu.vector_store %arg10[%c0_6, %c0_7, %c0_8], %9 {strides = array<i32>} : memref<8x8x128xf32, #tpu.memory_space<vmem>>, vector<8x8x128xf32>,
    %c0_9 = arith.constant 0 : index
    %c0_10 = arith.constant 0 : index
    %11 = vector.load %arg4[%c0_9, %c0_10] : memref<64x256xf32, #tpu.memory_space<vmem>>, vector<64x256xf32>
    %c0_11 = arith.constant 0 : index
    %c0_12 = arith.constant 0 : index
    %12 = vector.load %arg5[%c0_11, %c0_12] : memref<1x128xf32, #tpu.memory_space<vmem>>, vector<1x128xf32>
    %c0_13 = arith.constant 0 : index
    %c0_14 = arith.constant 0 : index
    %13 = vector.load %arg8[%c0_13, %c0_14] : memref<8x1xi32, #tpu.memory_space<vmem>>, vector<8x1xi32>
    %c1_i32 = arith.constant 1 : i32
    %14 = vector.broadcast %c1_i32 : i32 to vector<8x1xi32>
    %15 = arith.subi %13, %14 : vector<8x1xi32>
    %16 = tpu.iota {dimensions = array<i32: 1>} : vector<8x128xi32>
    %c64_i32 = arith.constant 64 : i32
    %17 = vector.broadcast %c64_i32 : i32 to vector<8x128xi32>
    %18 = arith.cmpi sge, %16, %17 : vector<8x128xi32>
    %c96_i32 = arith.constant 96 : i32
    %19 = vector.broadcast %c96_i32 : i32 to vector<8x128xi32>
    %20 = arith.cmpi slt, %16, %19 : vector<8x128xi32>
    %21 = arith.andi %18, %20 : vector<8x128xi1>
    %cst = arith.constant 1.000000e+00 : f32
    %cst_15 = arith.constant 5.000000e-01 : f32
    %22 = vector.broadcast %cst : f32 to vector<8x128xf32>
    %23 = vector.broadcast %cst_15 : f32 to vector<8x128xf32>
    %24 = arith.select %21, %22, %23 : vector<8x128xi1>, vector<8x128xf32>
    %cst_16 = arith.constant 0.000000e+00 : f32
    %cst_17 = arith.constant 5.000000e-01 : f32
    %25 = vector.broadcast %cst_16 : f32 to vector<8x128xf32>
    %26 = vector.broadcast %cst_17 : f32 to vector<8x128xf32>
    %27 = arith.select %21, %25, %26 : vector<8x128xi1>, vector<8x128xf32>
    %cst_18 = arith.constant 0.000000e+00 : f32
    %28 = vector.broadcast %cst_18 : f32 to vector<8x32xf32>
    %cst_19 = arith.constant 0.000000e+00 : f32
    %29 = vector.broadcast %cst_19 : f32 to vector<8x128xf32>
    %c0_20 = arith.constant 0 : index
    %c0_21 = arith.constant 0 : index
    %c0_22 = arith.constant 0 : index
    %30 = vector.load %arg10[%c0_20, %c0_21, %c0_22] : memref<8x8x128xf32, #tpu.memory_space<vmem>>, vector<1x8x128xf32>
    %31 = vector.shape_cast %30 : vector<1x8x128xf32> to vector<8x128xf32>
    %32 = arith.addf %31, %29 : vector<8x128xf32>
    %33 = arith.mulf %32, %24 : vector<8x128xf32>
    %34 = math.tanh %33 : vector<8x128xf32>
    %35 = arith.mulf %34, %24 : vector<8x128xf32>
    %36 = arith.addf %35, %27 : vector<8x128xf32>
    %37 = vector.extract_strided_slice %36 {offsets = [0, 0], sizes = [8, 32], strides = [1, 1]} : vector<8x128xf32> to vector<8x32xf32>
    %38 = vector.extract_strided_slice %36 {offsets = [0, 32], sizes = [8, 32], strides = [1, 1]} : vector<8x128xf32> to vector<8x32xf32>
    %39 = vector.extract_strided_slice %36 {offsets = [0, 64], sizes = [8, 32], strides = [1, 1]} : vector<8x128xf32> to vector<8x32xf32>
    %40 = vector.extract_strided_slice %36 {offsets = [0, 96], sizes = [8, 32], strides = [1, 1]} : vector<8x128xf32> to vector<8x32xf32>
    %41 = arith.mulf %38, %28 : vector<8x32xf32>
    %42 = arith.mulf %37, %39 : vector<8x32xf32>
    %43 = arith.addf %41, %42 : vector<8x32xf32>
    %44 = math.tanh %43 : vector<8x32xf32>
    %45 = arith.mulf %40, %44 : vector<8x32xf32>
    %46 = tpu.concatenate %45, %28 in 1 : vector<8x32xf32>, vector<8x32xf32> -> vector<8x64xf32>
    %cst_23 = arith.constant dense<0.000000e+00> : vector<8x256xf32>
    %47 = tpu.matmul %46, %11, %cst_23 {dimension_numbers = #tpu.dot_dimension_numbers<[1], [0], [0], [1], [0, 0, 1, 1], [], []>} : vector<8x64xf32>, vector<64x256xf32>, vector<8x256xf32> -> vector<8x256xf32>
    %48 = vector.extract_strided_slice %47 {offsets = [0, 0], sizes = [8, 128], strides = [1, 1]} : vector<8x256xf32> to vector<8x128xf32>
    %49 = vector.broadcast %12 : vector<1x128xf32> to vector<8x128xf32>
    %50 = arith.addf %48, %49 : vector<8x128xf32>
    %51 = arith.mulf %50, %24 : vector<8x128xf32>
    %52 = math.tanh %51 : vector<8x128xf32>
    %53 = arith.mulf %52, %24 : vector<8x128xf32>
    %54 = arith.addf %53, %27 : vector<8x128xf32>
    %55 = vector.extract_strided_slice %54 {offsets = [0, 0], sizes = [8, 32], strides = [1, 1]} : vector<8x128xf32> to vector<8x32xf32>
    %56 = vector.extract_strided_slice %54 {offsets = [0, 32], sizes = [8, 32], strides = [1, 1]} : vector<8x128xf32> to vector<8x32xf32>
    %57 = vector.extract_strided_slice %54 {offsets = [0, 64], sizes = [8, 32], strides = [1, 1]} : vector<8x128xf32> to vector<8x32xf32>
    %58 = vector.extract_strided_slice %54 {offsets = [0, 96], sizes = [8, 32], strides = [1, 1]} : vector<8x128xf32> to vector<8x32xf32>
    %59 = arith.mulf %56, %28 : vector<8x32xf32>
    %60 = arith.mulf %55, %57 : vector<8x32xf32>
    %61 = arith.addf %59, %60 : vector<8x32xf32>
    %62 = math.tanh %61 : vector<8x32xf32>
    %63 = arith.mulf %58, %62 : vector<8x32xf32>
    %64 = vector.extract_strided_slice %47 {offsets = [0, 128], sizes = [8, 128], strides = [1, 1]} : vector<8x256xf32> to vector<8x128xf32>
    %c0_i32 = arith.constant 0 : i32
    %65 = vector.broadcast %c0_i32 : i32 to vector<8x1xi32>
    %66 = arith.cmpi eq, %15, %65 : vector<8x1xi32>
    %67 = vector.shape_cast %66 : vector<8x1xi1> to vector<8x1xi1>
    %68 = vector.broadcast %67 : vector<8x1xi1> to vector<8x32xi1>
    %69 = arith.select %68, %63, %28 : vector<8x32xi1>, vector<8x32xf32>
    %c1 = arith.constant 1 : index
    %c0_24 = arith.constant 0 : index
    %c0_25 = arith.constant 0 : index
    %70 = vector.load %arg10[%c1, %c0_24, %c0_25] : memref<8x8x128xf32, #tpu.memory_space<vmem>>, vector<1x8x128xf32>
    %71 = vector.shape_cast %70 : vector<1x8x128xf32> to vector<8x128xf32>
    %72 = arith.addf %71, %64 : vector<8x128xf32>
    %73 = arith.mulf %72, %24 : vector<8x128xf32>
    %74 = math.tanh %73 : vector<8x128xf32>
    %75 = arith.mulf %74, %24 : vector<8x128xf32>
    %76 = arith.addf %75, %27 : vector<8x128xf32>
    %77 = vector.extract_strided_slice %76 {offsets = [0, 0], sizes = [8, 32], strides = [1, 1]} : vector<8x128xf32> to vector<8x32xf32>
    %78 = vector.extract_strided_slice %76 {offsets = [0, 32], sizes = [8, 32], strides = [1, 1]} : vector<8x128xf32> to vector<8x32xf32>
    %79 = vector.extract_strided_slice %76 {offsets = [0, 64], sizes = [8, 32], strides = [1, 1]} : vector<8x128xf32> to vector<8x32xf32>
    %80 = vector.extract_strided_slice %76 {offsets = [0, 96], sizes = [8, 32], strides = [1, 1]} : vector<8x128xf32> to vector<8x32xf32>
    %81 = arith.mulf %78, %43 : vector<8x32xf32>
    %82 = arith.mulf %77, %79 : vector<8x32xf32>
    %83 = arith.addf %81, %82 : vector<8x32xf32>
    %84 = math.tanh %83 : vector<8x32xf32>
    %85 = arith.mulf %80, %84 : vector<8x32xf32>
    %86 = tpu.concatenate %85, %63 in 1 : vector<8x32xf32>, vector<8x32xf32> -> vector<8x64xf32>
    %cst_26 = arith.constant dense<0.000000e+00> : vector<8x256xf32>
    %87 = tpu.matmul %86, %11, %cst_26 {dimension_numbers = #tpu.dot_dimension_numbers<[1], [0], [0], [1], [0, 0, 1, 1], [], []>} : vector<8x64xf32>, vector<64x256xf32>, vector<8x256xf32> -> vector<8x256xf32>
    %88 = vector.extract_strided_slice %87 {offsets = [0, 0], sizes = [8, 128], strides = [1, 1]} : vector<8x256xf32> to vector<8x128xf32>
    %89 = vector.broadcast %12 : vector<1x128xf32> to vector<8x128xf32>
    %90 = arith.addf %88, %89 : vector<8x128xf32>
    %91 = arith.mulf %90, %24 : vector<8x128xf32>
    %92 = math.tanh %91 : vector<8x128xf32>
    %93 = arith.mulf %92, %24 : vector<8x128xf32>
    %94 = arith.addf %93, %27 : vector<8x128xf32>
    %95 = vector.extract_strided_slice %94 {offsets = [0, 0], sizes = [8, 32], strides = [1, 1]} : vector<8x128xf32> to vector<8x32xf32>
    %96 = vector.extract_strided_slice %94 {offsets = [0, 32], sizes = [8, 32], strides = [1, 1]} : vector<8x128xf32> to vector<8x32xf32>
    %97 = vector.extract_strided_slice %94 {offsets = [0, 64], sizes = [8, 32], strides = [1, 1]} : vector<8x128xf32> to vector<8x32xf32>
    %98 = vector.extract_strided_slice %94 {offsets = [0, 96], sizes = [8, 32], strides = [1, 1]} : vector<8x128xf32> to vector<8x32xf32>
    %99 = arith.mulf %96, %61 : vector<8x32xf32>
    %100 = arith.mulf %95, %97 : vector<8x32xf32>
    %101 = arith.addf %99, %100 : vector<8x32xf32>
    %102 = math.tanh %101 : vector<8x32xf32>
    %103 = arith.mulf %98, %102 : vector<8x32xf32>
    %104 = vector.extract_strided_slice %87 {offsets = [0, 128], sizes = [8, 128], strides = [1, 1]} : vector<8x256xf32> to vector<8x128xf32>
    %c1_i32_27 = arith.constant 1 : i32
    %105 = vector.broadcast %c1_i32_27 : i32 to vector<8x1xi32>
    %106 = arith.cmpi eq, %15, %105 : vector<8x1xi32>
    %107 = vector.shape_cast %106 : vector<8x1xi1> to vector<8x1xi1>
    %108 = vector.broadcast %107 : vector<8x1xi1> to vector<8x32xi1>
    %109 = arith.select %108, %103, %69 : vector<8x32xi1>, vector<8x32xf32>
    %c2 = arith.constant 2 : index
    %c0_28 = arith.constant 0 : index
    %c0_29 = arith.constant 0 : index
    %110 = vector.load %arg10[%c2, %c0_28, %c0_29] : memref<8x8x128xf32, #tpu.memory_space<vmem>>, vector<1x8x128xf32>
    %111 = vector.shape_cast %110 : vector<1x8x128xf32> to vector<8x128xf32>
    %112 = arith.addf %111, %104 : vector<8x128xf32>
    %113 = arith.mulf %112, %24 : vector<8x128xf32>
    %114 = math.tanh %113 : vector<8x128xf32>
    %115 = arith.mulf %114, %24 : vector<8x128xf32>
    %116 = arith.addf %115, %27 : vector<8x128xf32>
    %117 = vector.extract_strided_slice %116 {offsets = [0, 0], sizes = [8, 32], strides = [1, 1]} : vector<8x128xf32> to vector<8x32xf32>
    %118 = vector.extract_strided_slice %116 {offsets = [0, 32], sizes = [8, 32], strides = [1, 1]} : vector<8x128xf32> to vector<8x32xf32>
    %119 = vector.extract_strided_slice %116 {offsets = [0, 64], sizes = [8, 32], strides = [1, 1]} : vector<8x128xf32> to vector<8x32xf32>
    %120 = vector.extract_strided_slice %116 {offsets = [0, 96], sizes = [8, 32], strides = [1, 1]} : vector<8x128xf32> to vector<8x32xf32>
    %121 = arith.mulf %118, %83 : vector<8x32xf32>
    %122 = arith.mulf %117, %119 : vector<8x32xf32>
    %123 = arith.addf %121, %122 : vector<8x32xf32>
    %124 = math.tanh %123 : vector<8x32xf32>
    %125 = arith.mulf %120, %124 : vector<8x32xf32>
    %126 = tpu.concatenate %125, %103 in 1 : vector<8x32xf32>, vector<8x32xf32> -> vector<8x64xf32>
    %cst_30 = arith.constant dense<0.000000e+00> : vector<8x256xf32>
    %127 = tpu.matmul %126, %11, %cst_30 {dimension_numbers = #tpu.dot_dimension_numbers<[1], [0], [0], [1], [0, 0, 1, 1], [], []>} : vector<8x64xf32>, vector<64x256xf32>, vector<8x256xf32> -> vector<8x256xf32>
    %128 = vector.extract_strided_slice %127 {offsets = [0, 0], sizes = [8, 128], strides = [1, 1]} : vector<8x256xf32> to vector<8x128xf32>
    %129 = vector.broadcast %12 : vector<1x128xf32> to vector<8x128xf32>
    %130 = arith.addf %128, %129 : vector<8x128xf32>
    %131 = arith.mulf %130, %24 : vector<8x128xf32>
    %132 = math.tanh %131 : vector<8x128xf32>
    %133 = arith.mulf %132, %24 : vector<8x128xf32>
    %134 = arith.addf %133, %27 : vector<8x128xf32>
    %135 = vector.extract_strided_slice %134 {offsets = [0, 0], sizes = [8, 32], strides = [1, 1]} : vector<8x128xf32> to vector<8x32xf32>
    %136 = vector.extract_strided_slice %134 {offsets = [0, 32], sizes = [8, 32], strides = [1, 1]} : vector<8x128xf32> to vector<8x32xf32>
    %137 = vector.extract_strided_slice %134 {offsets = [0, 64], sizes = [8, 32], strides = [1, 1]} : vector<8x128xf32> to vector<8x32xf32>
    %138 = vector.extract_strided_slice %134 {offsets = [0, 96], sizes = [8, 32], strides = [1, 1]} : vector<8x128xf32> to vector<8x32xf32>
    %139 = arith.mulf %136, %101 : vector<8x32xf32>
    %140 = arith.mulf %135, %137 : vector<8x32xf32>
    %141 = arith.addf %139, %140 : vector<8x32xf32>
    %142 = math.tanh %141 : vector<8x32xf32>
    %143 = arith.mulf %138, %142 : vector<8x32xf32>
    %144 = vector.extract_strided_slice %127 {offsets = [0, 128], sizes = [8, 128], strides = [1, 1]} : vector<8x256xf32> to vector<8x128xf32>
    %c2_i32 = arith.constant 2 : i32
    %145 = vector.broadcast %c2_i32 : i32 to vector<8x1xi32>
    %146 = arith.cmpi eq, %15, %145 : vector<8x1xi32>
    %147 = vector.shape_cast %146 : vector<8x1xi1> to vector<8x1xi1>
    %148 = vector.broadcast %147 : vector<8x1xi1> to vector<8x32xi1>
    %149 = arith.select %148, %143, %109 : vector<8x32xi1>, vector<8x32xf32>
    %c3 = arith.constant 3 : index
    %c0_31 = arith.constant 0 : index
    %c0_32 = arith.constant 0 : index
    %150 = vector.load %arg10[%c3, %c0_31, %c0_32] : memref<8x8x128xf32, #tpu.memory_space<vmem>>, vector<1x8x128xf32>
    %151 = vector.shape_cast %150 : vector<1x8x128xf32> to vector<8x128xf32>
    %152 = arith.addf %151, %144 : vector<8x128xf32>
    %153 = arith.mulf %152, %24 : vector<8x128xf32>
    %154 = math.tanh %153 : vector<8x128xf32>
    %155 = arith.mulf %154, %24 : vector<8x128xf32>
    %156 = arith.addf %155, %27 : vector<8x128xf32>
    %157 = vector.extract_strided_slice %156 {offsets = [0, 0], sizes = [8, 32], strides = [1, 1]} : vector<8x128xf32> to vector<8x32xf32>
    %158 = vector.extract_strided_slice %156 {offsets = [0, 32], sizes = [8, 32], strides = [1, 1]} : vector<8x128xf32> to vector<8x32xf32>
    %159 = vector.extract_strided_slice %156 {offsets = [0, 64], sizes = [8, 32], strides = [1, 1]} : vector<8x128xf32> to vector<8x32xf32>
    %160 = vector.extract_strided_slice %156 {offsets = [0, 96], sizes = [8, 32], strides = [1, 1]} : vector<8x128xf32> to vector<8x32xf32>
    %161 = arith.mulf %158, %123 : vector<8x32xf32>
    %162 = arith.mulf %157, %159 : vector<8x32xf32>
    %163 = arith.addf %161, %162 : vector<8x32xf32>
    %164 = math.tanh %163 : vector<8x32xf32>
    %165 = arith.mulf %160, %164 : vector<8x32xf32>
    %166 = tpu.concatenate %165, %143 in 1 : vector<8x32xf32>, vector<8x32xf32> -> vector<8x64xf32>
    %cst_33 = arith.constant dense<0.000000e+00> : vector<8x256xf32>
    %167 = tpu.matmul %166, %11, %cst_33 {dimension_numbers = #tpu.dot_dimension_numbers<[1], [0], [0], [1], [0, 0, 1, 1], [], []>} : vector<8x64xf32>, vector<64x256xf32>, vector<8x256xf32> -> vector<8x256xf32>
    %168 = vector.extract_strided_slice %167 {offsets = [0, 0], sizes = [8, 128], strides = [1, 1]} : vector<8x256xf32> to vector<8x128xf32>
    %169 = vector.broadcast %12 : vector<1x128xf32> to vector<8x128xf32>
    %170 = arith.addf %168, %169 : vector<8x128xf32>
    %171 = arith.mulf %170, %24 : vector<8x128xf32>
    %172 = math.tanh %171 : vector<8x128xf32>
    %173 = arith.mulf %172, %24 : vector<8x128xf32>
    %174 = arith.addf %173, %27 : vector<8x128xf32>
    %175 = vector.extract_strided_slice %174 {offsets = [0, 0], sizes = [8, 32], strides = [1, 1]} : vector<8x128xf32> to vector<8x32xf32>
    %176 = vector.extract_strided_slice %174 {offsets = [0, 32], sizes = [8, 32], strides = [1, 1]} : vector<8x128xf32> to vector<8x32xf32>
    %177 = vector.extract_strided_slice %174 {offsets = [0, 64], sizes = [8, 32], strides = [1, 1]} : vector<8x128xf32> to vector<8x32xf32>
    %178 = vector.extract_strided_slice %174 {offsets = [0, 96], sizes = [8, 32], strides = [1, 1]} : vector<8x128xf32> to vector<8x32xf32>
    %179 = arith.mulf %176, %141 : vector<8x32xf32>
    %180 = arith.mulf %175, %177 : vector<8x32xf32>
    %181 = arith.addf %179, %180 : vector<8x32xf32>
    %182 = math.tanh %181 : vector<8x32xf32>
    %183 = arith.mulf %178, %182 : vector<8x32xf32>
    %184 = vector.extract_strided_slice %167 {offsets = [0, 128], sizes = [8, 128], strides = [1, 1]} : vector<8x256xf32> to vector<8x128xf32>
    %c3_i32 = arith.constant 3 : i32
    %185 = vector.broadcast %c3_i32 : i32 to vector<8x1xi32>
    %186 = arith.cmpi eq, %15, %185 : vector<8x1xi32>
    %187 = vector.shape_cast %186 : vector<8x1xi1> to vector<8x1xi1>
    %188 = vector.broadcast %187 : vector<8x1xi1> to vector<8x32xi1>
    %189 = arith.select %188, %183, %149 : vector<8x32xi1>, vector<8x32xf32>
    %c4 = arith.constant 4 : index
    %c0_34 = arith.constant 0 : index
    %c0_35 = arith.constant 0 : index
    %190 = vector.load %arg10[%c4, %c0_34, %c0_35] : memref<8x8x128xf32, #tpu.memory_space<vmem>>, vector<1x8x128xf32>
    %191 = vector.shape_cast %190 : vector<1x8x128xf32> to vector<8x128xf32>
    %192 = arith.addf %191, %184 : vector<8x128xf32>
    %193 = arith.mulf %192, %24 : vector<8x128xf32>
    %194 = math.tanh %193 : vector<8x128xf32>
    %195 = arith.mulf %194, %24 : vector<8x128xf32>
    %196 = arith.addf %195, %27 : vector<8x128xf32>
    %197 = vector.extract_strided_slice %196 {offsets = [0, 0], sizes = [8, 32], strides = [1, 1]} : vector<8x128xf32> to vector<8x32xf32>
    %198 = vector.extract_strided_slice %196 {offsets = [0, 32], sizes = [8, 32], strides = [1, 1]} : vector<8x128xf32> to vector<8x32xf32>
    %199 = vector.extract_strided_slice %196 {offsets = [0, 64], sizes = [8, 32], strides = [1, 1]} : vector<8x128xf32> to vector<8x32xf32>
    %200 = vector.extract_strided_slice %196 {offsets = [0, 96], sizes = [8, 32], strides = [1, 1]} : vector<8x128xf32> to vector<8x32xf32>
    %201 = arith.mulf %198, %163 : vector<8x32xf32>
    %202 = arith.mulf %197, %199 : vector<8x32xf32>
    %203 = arith.addf %201, %202 : vector<8x32xf32>
    %204 = math.tanh %203 : vector<8x32xf32>
    %205 = arith.mulf %200, %204 : vector<8x32xf32>
    %206 = tpu.concatenate %205, %183 in 1 : vector<8x32xf32>, vector<8x32xf32> -> vector<8x64xf32>
    %cst_36 = arith.constant dense<0.000000e+00> : vector<8x256xf32>
    %207 = tpu.matmul %206, %11, %cst_36 {dimension_numbers = #tpu.dot_dimension_numbers<[1], [0], [0], [1], [0, 0, 1, 1], [], []>} : vector<8x64xf32>, vector<64x256xf32>, vector<8x256xf32> -> vector<8x256xf32>
    %208 = vector.extract_strided_slice %207 {offsets = [0, 0], sizes = [8, 128], strides = [1, 1]} : vector<8x256xf32> to vector<8x128xf32>
    %209 = vector.broadcast %12 : vector<1x128xf32> to vector<8x128xf32>
    %210 = arith.addf %208, %209 : vector<8x128xf32>
    %211 = arith.mulf %210, %24 : vector<8x128xf32>
    %212 = math.tanh %211 : vector<8x128xf32>
    %213 = arith.mulf %212, %24 : vector<8x128xf32>
    %214 = arith.addf %213, %27 : vector<8x128xf32>
    %215 = vector.extract_strided_slice %214 {offsets = [0, 0], sizes = [8, 32], strides = [1, 1]} : vector<8x128xf32> to vector<8x32xf32>
    %216 = vector.extract_strided_slice %214 {offsets = [0, 32], sizes = [8, 32], strides = [1, 1]} : vector<8x128xf32> to vector<8x32xf32>
    %217 = vector.extract_strided_slice %214 {offsets = [0, 64], sizes = [8, 32], strides = [1, 1]} : vector<8x128xf32> to vector<8x32xf32>
    %218 = vector.extract_strided_slice %214 {offsets = [0, 96], sizes = [8, 32], strides = [1, 1]} : vector<8x128xf32> to vector<8x32xf32>
    %219 = arith.mulf %216, %181 : vector<8x32xf32>
    %220 = arith.mulf %215, %217 : vector<8x32xf32>
    %221 = arith.addf %219, %220 : vector<8x32xf32>
    %222 = math.tanh %221 : vector<8x32xf32>
    %223 = arith.mulf %218, %222 : vector<8x32xf32>
    %224 = vector.extract_strided_slice %207 {offsets = [0, 128], sizes = [8, 128], strides = [1, 1]} : vector<8x256xf32> to vector<8x128xf32>
    %c4_i32 = arith.constant 4 : i32
    %225 = vector.broadcast %c4_i32 : i32 to vector<8x1xi32>
    %226 = arith.cmpi eq, %15, %225 : vector<8x1xi32>
    %227 = vector.shape_cast %226 : vector<8x1xi1> to vector<8x1xi1>
    %228 = vector.broadcast %227 : vector<8x1xi1> to vector<8x32xi1>
    %229 = arith.select %228, %223, %189 : vector<8x32xi1>, vector<8x32xf32>
    %c5 = arith.constant 5 : index
    %c0_37 = arith.constant 0 : index
    %c0_38 = arith.constant 0 : index
    %230 = vector.load %arg10[%c5, %c0_37, %c0_38] : memref<8x8x128xf32, #tpu.memory_space<vmem>>, vector<1x8x128xf32>
    %231 = vector.shape_cast %230 : vector<1x8x128xf32> to vector<8x128xf32>
    %232 = arith.addf %231, %224 : vector<8x128xf32>
    %233 = arith.mulf %232, %24 : vector<8x128xf32>
    %234 = math.tanh %233 : vector<8x128xf32>
    %235 = arith.mulf %234, %24 : vector<8x128xf32>
    %236 = arith.addf %235, %27 : vector<8x128xf32>
    %237 = vector.extract_strided_slice %236 {offsets = [0, 0], sizes = [8, 32], strides = [1, 1]} : vector<8x128xf32> to vector<8x32xf32>
    %238 = vector.extract_strided_slice %236 {offsets = [0, 32], sizes = [8, 32], strides = [1, 1]} : vector<8x128xf32> to vector<8x32xf32>
    %239 = vector.extract_strided_slice %236 {offsets = [0, 64], sizes = [8, 32], strides = [1, 1]} : vector<8x128xf32> to vector<8x32xf32>
    %240 = vector.extract_strided_slice %236 {offsets = [0, 96], sizes = [8, 32], strides = [1, 1]} : vector<8x128xf32> to vector<8x32xf32>
    %241 = arith.mulf %238, %203 : vector<8x32xf32>
    %242 = arith.mulf %237, %239 : vector<8x32xf32>
    %243 = arith.addf %241, %242 : vector<8x32xf32>
    %244 = math.tanh %243 : vector<8x32xf32>
    %245 = arith.mulf %240, %244 : vector<8x32xf32>
    %246 = tpu.concatenate %245, %223 in 1 : vector<8x32xf32>, vector<8x32xf32> -> vector<8x64xf32>
    %cst_39 = arith.constant dense<0.000000e+00> : vector<8x256xf32>
    %247 = tpu.matmul %246, %11, %cst_39 {dimension_numbers = #tpu.dot_dimension_numbers<[1], [0], [0], [1], [0, 0, 1, 1], [], []>} : vector<8x64xf32>, vector<64x256xf32>, vector<8x256xf32> -> vector<8x256xf32>
    %248 = vector.extract_strided_slice %247 {offsets = [0, 0], sizes = [8, 128], strides = [1, 1]} : vector<8x256xf32> to vector<8x128xf32>
    %249 = vector.broadcast %12 : vector<1x128xf32> to vector<8x128xf32>
    %250 = arith.addf %248, %249 : vector<8x128xf32>
    %251 = arith.mulf %250, %24 : vector<8x128xf32>
    %252 = math.tanh %251 : vector<8x128xf32>
    %253 = arith.mulf %252, %24 : vector<8x128xf32>
    %254 = arith.addf %253, %27 : vector<8x128xf32>
    %255 = vector.extract_strided_slice %254 {offsets = [0, 0], sizes = [8, 32], strides = [1, 1]} : vector<8x128xf32> to vector<8x32xf32>
    %256 = vector.extract_strided_slice %254 {offsets = [0, 32], sizes = [8, 32], strides = [1, 1]} : vector<8x128xf32> to vector<8x32xf32>
    %257 = vector.extract_strided_slice %254 {offsets = [0, 64], sizes = [8, 32], strides = [1, 1]} : vector<8x128xf32> to vector<8x32xf32>
    %258 = vector.extract_strided_slice %254 {offsets = [0, 96], sizes = [8, 32], strides = [1, 1]} : vector<8x128xf32> to vector<8x32xf32>
    %259 = arith.mulf %256, %221 : vector<8x32xf32>
    %260 = arith.mulf %255, %257 : vector<8x32xf32>
    %261 = arith.addf %259, %260 : vector<8x32xf32>
    %262 = math.tanh %261 : vector<8x32xf32>
    %263 = arith.mulf %258, %262 : vector<8x32xf32>
    %264 = vector.extract_strided_slice %247 {offsets = [0, 128], sizes = [8, 128], strides = [1, 1]} : vector<8x256xf32> to vector<8x128xf32>
    %c5_i32 = arith.constant 5 : i32
    %265 = vector.broadcast %c5_i32 : i32 to vector<8x1xi32>
    %266 = arith.cmpi eq, %15, %265 : vector<8x1xi32>
    %267 = vector.shape_cast %266 : vector<8x1xi1> to vector<8x1xi1>
    %268 = vector.broadcast %267 : vector<8x1xi1> to vector<8x32xi1>
    %269 = arith.select %268, %263, %229 : vector<8x32xi1>, vector<8x32xf32>
    %c6 = arith.constant 6 : index
    %c0_40 = arith.constant 0 : index
    %c0_41 = arith.constant 0 : index
    %270 = vector.load %arg10[%c6, %c0_40, %c0_41] : memref<8x8x128xf32, #tpu.memory_space<vmem>>, vector<1x8x128xf32>
    %271 = vector.shape_cast %270 : vector<1x8x128xf32> to vector<8x128xf32>
    %272 = arith.addf %271, %264 : vector<8x128xf32>
    %273 = arith.mulf %272, %24 : vector<8x128xf32>
    %274 = math.tanh %273 : vector<8x128xf32>
    %275 = arith.mulf %274, %24 : vector<8x128xf32>
    %276 = arith.addf %275, %27 : vector<8x128xf32>
    %277 = vector.extract_strided_slice %276 {offsets = [0, 0], sizes = [8, 32], strides = [1, 1]} : vector<8x128xf32> to vector<8x32xf32>
    %278 = vector.extract_strided_slice %276 {offsets = [0, 32], sizes = [8, 32], strides = [1, 1]} : vector<8x128xf32> to vector<8x32xf32>
    %279 = vector.extract_strided_slice %276 {offsets = [0, 64], sizes = [8, 32], strides = [1, 1]} : vector<8x128xf32> to vector<8x32xf32>
    %280 = vector.extract_strided_slice %276 {offsets = [0, 96], sizes = [8, 32], strides = [1, 1]} : vector<8x128xf32> to vector<8x32xf32>
    %281 = arith.mulf %278, %243 : vector<8x32xf32>
    %282 = arith.mulf %277, %279 : vector<8x32xf32>
    %283 = arith.addf %281, %282 : vector<8x32xf32>
    %284 = math.tanh %283 : vector<8x32xf32>
    %285 = arith.mulf %280, %284 : vector<8x32xf32>
    %286 = tpu.concatenate %285, %263 in 1 : vector<8x32xf32>, vector<8x32xf32> -> vector<8x64xf32>
    %cst_42 = arith.constant dense<0.000000e+00> : vector<8x256xf32>
    %287 = tpu.matmul %286, %11, %cst_42 {dimension_numbers = #tpu.dot_dimension_numbers<[1], [0], [0], [1], [0, 0, 1, 1], [], []>} : vector<8x64xf32>, vector<64x256xf32>, vector<8x256xf32> -> vector<8x256xf32>
    %288 = vector.extract_strided_slice %287 {offsets = [0, 0], sizes = [8, 128], strides = [1, 1]} : vector<8x256xf32> to vector<8x128xf32>
    %289 = vector.broadcast %12 : vector<1x128xf32> to vector<8x128xf32>
    %290 = arith.addf %288, %289 : vector<8x128xf32>
    %291 = arith.mulf %290, %24 : vector<8x128xf32>
    %292 = math.tanh %291 : vector<8x128xf32>
    %293 = arith.mulf %292, %24 : vector<8x128xf32>
    %294 = arith.addf %293, %27 : vector<8x128xf32>
    %295 = vector.extract_strided_slice %294 {offsets = [0, 0], sizes = [8, 32], strides = [1, 1]} : vector<8x128xf32> to vector<8x32xf32>
    %296 = vector.extract_strided_slice %294 {offsets = [0, 32], sizes = [8, 32], strides = [1, 1]} : vector<8x128xf32> to vector<8x32xf32>
    %297 = vector.extract_strided_slice %294 {offsets = [0, 64], sizes = [8, 32], strides = [1, 1]} : vector<8x128xf32> to vector<8x32xf32>
    %298 = vector.extract_strided_slice %294 {offsets = [0, 96], sizes = [8, 32], strides = [1, 1]} : vector<8x128xf32> to vector<8x32xf32>
    %299 = arith.mulf %296, %261 : vector<8x32xf32>
    %300 = arith.mulf %295, %297 : vector<8x32xf32>
    %301 = arith.addf %299, %300 : vector<8x32xf32>
    %302 = math.tanh %301 : vector<8x32xf32>
    %303 = arith.mulf %298, %302 : vector<8x32xf32>
    %304 = vector.extract_strided_slice %287 {offsets = [0, 128], sizes = [8, 128], strides = [1, 1]} : vector<8x256xf32> to vector<8x128xf32>
    %c6_i32 = arith.constant 6 : i32
    %305 = vector.broadcast %c6_i32 : i32 to vector<8x1xi32>
    %306 = arith.cmpi eq, %15, %305 : vector<8x1xi32>
    %307 = vector.shape_cast %306 : vector<8x1xi1> to vector<8x1xi1>
    %308 = vector.broadcast %307 : vector<8x1xi1> to vector<8x32xi1>
    %309 = arith.select %308, %303, %269 : vector<8x32xi1>, vector<8x32xf32>
    %c7 = arith.constant 7 : index
    %c0_43 = arith.constant 0 : index
    %c0_44 = arith.constant 0 : index
    %310 = vector.load %arg10[%c7, %c0_43, %c0_44] : memref<8x8x128xf32, #tpu.memory_space<vmem>>, vector<1x8x128xf32>
    %311 = vector.shape_cast %310 : vector<1x8x128xf32> to vector<8x128xf32>
    %312 = arith.addf %311, %304 : vector<8x128xf32>
    %313 = arith.mulf %312, %24 : vector<8x128xf32>
    %314 = math.tanh %313 : vector<8x128xf32>
    %315 = arith.mulf %314, %24 : vector<8x128xf32>
    %316 = arith.addf %315, %27 : vector<8x128xf32>
    %317 = vector.extract_strided_slice %316 {offsets = [0, 0], sizes = [8, 32], strides = [1, 1]} : vector<8x128xf32> to vector<8x32xf32>
    %318 = vector.extract_strided_slice %316 {offsets = [0, 32], sizes = [8, 32], strides = [1, 1]} : vector<8x128xf32> to vector<8x32xf32>
    %319 = vector.extract_strided_slice %316 {offsets = [0, 64], sizes = [8, 32], strides = [1, 1]} : vector<8x128xf32> to vector<8x32xf32>
    %320 = vector.extract_strided_slice %316 {offsets = [0, 96], sizes = [8, 32], strides = [1, 1]} : vector<8x128xf32> to vector<8x32xf32>
    %321 = arith.mulf %318, %283 : vector<8x32xf32>
    %322 = arith.mulf %317, %319 : vector<8x32xf32>
    %323 = arith.addf %321, %322 : vector<8x32xf32>
    %324 = math.tanh %323 : vector<8x32xf32>
    %325 = arith.mulf %320, %324 : vector<8x32xf32>
    %326 = tpu.concatenate %325, %303 in 1 : vector<8x32xf32>, vector<8x32xf32> -> vector<8x64xf32>
    %cst_45 = arith.constant dense<0.000000e+00> : vector<8x256xf32>
    %327 = tpu.matmul %326, %11, %cst_45 {dimension_numbers = #tpu.dot_dimension_numbers<[1], [0], [0], [1], [0, 0, 1, 1], [], []>} : vector<8x64xf32>, vector<64x256xf32>, vector<8x256xf32> -> vector<8x256xf32>
    %328 = vector.extract_strided_slice %327 {offsets = [0, 0], sizes = [8, 128], strides = [1, 1]} : vector<8x256xf32> to vector<8x128xf32>
    %329 = vector.broadcast %12 : vector<1x128xf32> to vector<8x128xf32>
    %330 = arith.addf %328, %329 : vector<8x128xf32>
    %331 = arith.mulf %330, %24 : vector<8x128xf32>
    %332 = math.tanh %331 : vector<8x128xf32>
    %333 = arith.mulf %332, %24 : vector<8x128xf32>
    %334 = arith.addf %333, %27 : vector<8x128xf32>
    %335 = vector.extract_strided_slice %334 {offsets = [0, 0], sizes = [8, 32], strides = [1, 1]} : vector<8x128xf32> to vector<8x32xf32>
    %336 = vector.extract_strided_slice %334 {offsets = [0, 32], sizes = [8, 32], strides = [1, 1]} : vector<8x128xf32> to vector<8x32xf32>
    %337 = vector.extract_strided_slice %334 {offsets = [0, 64], sizes = [8, 32], strides = [1, 1]} : vector<8x128xf32> to vector<8x32xf32>
    %338 = vector.extract_strided_slice %334 {offsets = [0, 96], sizes = [8, 32], strides = [1, 1]} : vector<8x128xf32> to vector<8x32xf32>
    %339 = arith.mulf %336, %301 : vector<8x32xf32>
    %340 = arith.mulf %335, %337 : vector<8x32xf32>
    %341 = arith.addf %339, %340 : vector<8x32xf32>
    %342 = math.tanh %341 : vector<8x32xf32>
    %343 = arith.mulf %338, %342 : vector<8x32xf32>
    %c7_i32 = arith.constant 7 : i32
    %344 = vector.broadcast %c7_i32 : i32 to vector<8x1xi32>
    %345 = arith.cmpi eq, %15, %344 : vector<8x1xi32>
    %346 = vector.shape_cast %345 : vector<8x1xi1> to vector<8x1xi1>
    %347 = vector.broadcast %346 : vector<8x1xi1> to vector<8x32xi1>
    %348 = arith.select %347, %343, %309 : vector<8x32xi1>, vector<8x32xf32>
    %c0_46 = arith.constant 0 : index
    %c0_47 = arith.constant 0 : index
    %349 = vector.load %arg6[%c0_46, %c0_47] : memref<32x128xf32, #tpu.memory_space<vmem>>, vector<32x128xf32>
    %cst_48 = arith.constant dense<0.000000e+00> : vector<8x128xf32>
    %350 = tpu.matmul %348, %349, %cst_48 {dimension_numbers = #tpu.dot_dimension_numbers<[1], [0], [0], [1], [0, 0, 1, 1], [], []>} : vector<8x32xf32>, vector<32x128xf32>, vector<8x128xf32> -> vector<8x128xf32>
    %c0_49 = arith.constant 0 : index
    %c0_50 = arith.constant 0 : index
    %351 = vector.load %arg7[%c0_49, %c0_50] : memref<1x128xf32, #tpu.memory_space<vmem>>, vector<1x128xf32>
    %352 = vector.broadcast %351 : vector<1x128xf32> to vector<8x128xf32>
    %353 = arith.addf %350, %352 : vector<8x128xf32>
    %c0_51 = arith.constant 0 : index
    %c0_52 = arith.constant 0 : index
    %354 = vector.load %arg9[%c0_51, %c0_52] : memref<8x128xf32, #tpu.memory_space<vmem>>, vector<8x128xf32>
    tpu.vector_store %arg9[%c0_51, %c0_52], %353 {strides = array<i32>} : memref<8x128xf32, #tpu.memory_space<vmem>>, vector<8x128xf32>,
    return
  }
}

</mosaic_0001>

<llo_original>
// kernel: tpu_custom_call.1
$region0: #{tpu_custom_call.1}
  #allocation0 [shape = 'u32[]', space=smem, size = 0x4, offset = 0x4, fixed_abs, tag = 'smem constant byte address 0x4 - core index']
  #allocation1 [shape = 'u32[144,128]{1,0:T(1,128)}', space=vmem, size = 0x12000, scoped, tag = 'internal scratch']
  #allocation2 [shape = 'f32[8,8,128]{2,1,0:T(8,128)}', space=vmem, size = 0x8000, scoped, tag = 'scratch operand']
  #allocation3 [shape = 's32[1]{0:T(128)S(6)}', space=smem, size = 0x200, scoped, tag = 'scoped memory for tpu_custom_call.1']
  %s0 = inlined_call_operand.<no memory space> [shape: s32[1], index: 0, kind: input, shape index: {}]
  %s1 = inlined_call_operand.vmem [shape: f32[8,8,1], index: 1, kind: input, shape index: {}]
  %s2 = inlined_call_operand.vmem [shape: f32[1,128], index: 2, kind: input, shape index: {}]
  %s3 = inlined_call_operand.vmem [shape: f32[1,128], index: 3, kind: input, shape index: {}]
  %s4 = inlined_call_operand.hbm [shape: f32[64,256], index: 4, kind: input, shape index: {}]
  %s5 = inlined_call_operand.vmem [shape: f32[1,128], index: 5, kind: input, shape index: {}]
  %s6 = inlined_call_operand.vmem [shape: f32[32,128], index: 6, kind: input, shape index: {}]
  %s7 = inlined_call_operand.vmem [shape: f32[1,128], index: 7, kind: input, shape index: {}]
  %s8 = inlined_call_operand.vmem [shape: s32[8,1], index: 8, kind: input, shape index: {}]
  %s9 = inlined_call_operand.hbm [shape: f32[8,128], index: 9, kind: output, shape index: {}]
  %s10 = sld [smem:[#allocation0]]
  $region50: #{tpu_custom_call.1} parent=0
    _
  %s12 = ssub.s32 1, %s10
  %s13 = scalar_select 0, %s12, %s10
  %14 = sst [smem:[#allocation3]] %s0
  $region1: #{tpu_custom_call.1} parent=0
    #allocation4 [shape = 'u8[65536]{0}', space=vmem, size = 0x10000, scoped, tag = 'input window, operand 4, single buffered']
    #allocation5 [shape = 's32[1]{0}', space=sflag, size = 0x4, scoped, tag = 'scoped memory for tpu_custom_call.1']
    #allocation6 [shape = 's32[1]{0}', space=sflag, size = 0x4, scoped, tag = 'scoped memory for tpu_custom_call.1']
    #allocation7 [shape = 'u8[4096]{0}', space=vmem, size = 0x1000, scoped, tag = 'output window, operand 0, single buffered']
    %15 = vsyncpa [#allocation5], 0
    %16 = vsyncpa [#allocation6], 0
    // Predicated region
    $region2: #{tpu_custom_call.1} parent=1 // pred_check
      _
    $region3: #{tpu_custom_call.1} parent=1 // pred_check_branch
      %18 = sbr.rel (0) target = $region5
    $region4: #{tpu_custom_call.1} parent=1 // pred_region
      _
    $region5: #{tpu_custom_call.1} parent=1 // pred_fallthru
      _
    // Predicated region
    $region6: #{tpu_custom_call.1} parent=1 // pred_check
      _
    $region7: #{tpu_custom_call.1} parent=1 // pred_check_branch
      %20 = sbr.rel (0) target = $region9
    $region8: #{tpu_custom_call.1} parent=1 // pred_region
      _
    $region9: #{tpu_custom_call.1} parent=1 // pred_fallthru
      _
    // Predicated region
    $region10: #{tpu_custom_call.1} parent=1 // pred_check
      _
    $region11: #{tpu_custom_call.1} parent=1 // pred_check_branch
      %22 = sbr.rel (0) target = $region13
    $region12: #{tpu_custom_call.1} parent=1 // pred_region
      _
    $region13: #{tpu_custom_call.1} parent=1 // pred_fallthru
      _
    // Predicated region
    $region14: #{tpu_custom_call.1} parent=1 // pred_check
      _
    $region15: #{tpu_custom_call.1} parent=1 // pred_check_branch
      %24 = sbr.rel (0) target = $region17
    $region16: #{tpu_custom_call.1} parent=1 // pred_region
      _
    $region17: #{tpu_custom_call.1} parent=1 // pred_fallthru
      _
    // Predicated region
    $region18: #{tpu_custom_call.1} parent=1 // pred_check
      _
    $region19: #{tpu_custom_call.1} parent=1 // pred_check_branch
      %26 = sbr.rel (0) target = $region21
    $region20: #{tpu_custom_call.1} parent=1 // pred_region
      %s28 = ssub.s32 2048, 2048
      %29 = vsyncadd [#allocation5], %s28
      %s30 = sshll.u32 [#allocation4], 4
      %s31 = int_to_ptr.vmem [resolvable:$true] %s30
      %36 = dma.hbm_to_vmem [thread:$0]  %s4, 2048, %s31, [#allocation5], 256, 256, 16
    $region21: #{tpu_custom_call.1} parent=1 // pred_fallthru
      _
    // Predicated region
    $region22: #{tpu_custom_call.1} parent=1 // pred_check
      _
    $region23: #{tpu_custom_call.1} parent=1 // pred_check_branch
      %38 = sbr.rel (0) target = $region25
    $region24: #{tpu_custom_call.1} parent=1 // pred_region
      _
    $region25: #{tpu_custom_call.1} parent=1 // pred_fallthru
      _
    // Predicated region
    $region26: #{tpu_custom_call.1} parent=1 // pred_check
      _
    $region27: #{tpu_custom_call.1} parent=1 // pred_check_branch
      %40 = sbr.rel (0) target = $region29
    $region28: #{tpu_custom_call.1} parent=1 // pred_region
      _
    $region29: #{tpu_custom_call.1} parent=1 // pred_fallthru
      _
    // Predicated region
    $region30: #{tpu_custom_call.1} parent=1 // pred_check
      _
    $region31: #{tpu_custom_call.1} parent=1 // pred_check_branch
      %42 = sbr.rel (0) target = $region33
    $region32: #{tpu_custom_call.1} parent=1 // pred_region
      _
    $region33: #{tpu_custom_call.1} parent=1 // pred_fallthru
      _
    // Predicated region
    $region34: #{tpu_custom_call.1} parent=1 // pred_check
      _
    $region35: #{tpu_custom_call.1} parent=1 // pred_check_branch
      %44 = sbr.rel (0) target = $region37
    $region36: #{tpu_custom_call.1} parent=1 // pred_region
      _
    $region37: #{tpu_custom_call.1} parent=1 // pred_fallthru
      _
    // Predicated region
    $region38: #{tpu_custom_call.1} parent=1 // pred_check
      _
    $region39: #{tpu_custom_call.1} parent=1 // pred_check_branch
      %46 = sbr.rel (0) target = $region41
    $region40: #{tpu_custom_call.1} parent=1 // pred_region
      %47 = dma.done [#allocation5], 2048
    $region41: #{tpu_custom_call.1} parent=1 // pred_fallthru
      _
    %v48 = vld [vmem:[%s1] sm:$0xff]
    %v49 = vld [vmem:[%s1 + $0x8] sm:$0xff]
    %v50 = vld [vmem:[%s1 + $0x10] sm:$0xff]
    %v51 = vld [vmem:[%s1 + $0x18] sm:$0xff]
    %v52 = vld [vmem:[%s1 + $0x20] sm:$0xff]
    %v53 = vld [vmem:[%s1 + $0x28] sm:$0xff]
    %v54 = vld [vmem:[%s1 + $0x30] sm:$0xff]
    %v55 = vld [vmem:[%s1 + $0x38] sm:$0xff]
    %v56 = vld [vmem:[%s2] sm:$0x1]
    %58 = vset.pattern.permute.xlu0 0
    %59 = vperm.xlu0 %58, %v48
    %v60 = vpop.permute.xlu0 %59
    %63 = vset.pattern.permute.xlu0 0
    %64 = vperm.xlu0 %63, %v49
    %v65 = vpop.permute.xlu0 %64
    %68 = vset.pattern.permute.xlu0 0
    %69 = vperm.xlu0 %68, %v50
    %v70 = vpop.permute.xlu0 %69
    %73 = vset.pattern.permute.xlu0 0
    %74 = vperm.xlu0 %73, %v51
    %v75 = vpop.permute.xlu0 %74
    %78 = vset.pattern.permute.xlu0 0
    %79 = vperm.xlu0 %78, %v52
    %v80 = vpop.permute.xlu0 %79
    %83 = vset.pattern.permute.xlu0 0
    %84 = vperm.xlu0 %83, %v53
    %v85 = vpop.permute.xlu0 %84
    %88 = vset.pattern.permute.xlu0 0
    %89 = vperm.xlu0 %88, %v54
    %v90 = vpop.permute.xlu0 %89
    %93 = vset.pattern.permute.xlu0 0
    %94 = vperm.xlu0 %93, %v55
    %v95 = vpop.permute.xlu0 %94
    %v98 = vlaneseq
    %v99 = vshrl.u32 %v98, 7
    %v100 = vsub.s32 0, %v99
    %v101 = vrot.slane %v56, %v100
    %v103 = vmul.f32 %v60, %v101
    %v104 = vmul.f32 %v65, %v101
    %v105 = vmul.f32 %v70, %v101
    %v106 = vmul.f32 %v75, %v101
    %v107 = vmul.f32 %v80, %v101
    %v108 = vmul.f32 %v85, %v101
    %v109 = vmul.f32 %v90, %v101
    %v110 = vmul.f32 %v95, %v101
    %v111 = vld [vmem:[%s3] sm:$0x1]
    %v113 = vlaneseq
    %v114 = vshrl.u32 %v113, 7
    %v115 = vsub.s32 0, %v114
    %v116 = vrot.slane %v111, %v115
    %v118 = vadd.f32 %v103, %v116
    %v119 = vadd.f32 %v104, %v116
    %v120 = vadd.f32 %v105, %v116
    %v121 = vadd.f32 %v106, %v116
    %v122 = vadd.f32 %v107, %v116
    %v123 = vadd.f32 %v108, %v116
    %v124 = vadd.f32 %v109, %v116
    %v125 = vadd.f32 %v110, %v116
    %126 = vst [vmem:[#allocation2] sm:$0xff] %v118
    %127 = vst [vmem:[#allocation2 + $0x8] sm:$0xff] %v119
    %128 = vst [vmem:[#allocation2 + $0x10] sm:$0xff] %v120
    %129 = vst [vmem:[#allocation2 + $0x18] sm:$0xff] %v121
    %130 = vst [vmem:[#allocation2 + $0x20] sm:$0xff] %v122
    %131 = vst [vmem:[#allocation2 + $0x28] sm:$0xff] %v123
    %132 = vst [vmem:[#allocation2 + $0x30] sm:$0xff] %v124
    %133 = vst [vmem:[#allocation2 + $0x38] sm:$0xff] %v125
    %v134 = vld [vmem:[#allocation4] sm:$0xff]
    %v135 = vld [vmem:[#allocation4 + $0x8] sm:$0xff]
    %v136 = vld [vmem:[#allocation4 + $0x10] sm:$0xff]
    %v137 = vld [vmem:[#allocation4 + $0x18] sm:$0xff]
    %v138 = vld [vmem:[#allocation4 + $0x20] sm:$0xff]
    %v139 = vld [vmem:[#allocation4 + $0x28] sm:$0xff]
    %v140 = vld [vmem:[#allocation4 + $0x30] sm:$0xff]
    %v141 = vld [vmem:[#allocation4 + $0x38] sm:$0xff]
    %v142 = vld [vmem:[#allocation4 + $0x40] sm:$0xff]
    %v143 = vld [vmem:[#allocation4 + $0x48] sm:$0xff]
    %v144 = vld [vmem:[#allocation4 + $0x50] sm:$0xff]
    %v145 = vld [vmem:[#allocation4 + $0x58] sm:$0xff]
    %v146 = vld [vmem:[#allocation4 + $0x60] sm:$0xff]
    %v147 = vld [vmem:[#allocation4 + $0x68] sm:$0xff]
    %v148 = vld [vmem:[#allocation4 + $0x70] sm:$0xff]
    %v149 = vld [vmem:[#allocation4 + $0x78] sm:$0xff]
    %v150 = vld [vmem:[%s5] sm:$0x1]
    %v151 = vld [vmem:[%s8] sm:$0xff]
    %v152 = vsub.s32 %v151, 1
    %v153 = vlaneseq
    %v154 = vand.u32 %v153, 127
    %vm155 = vcmp.ge.s32.totalorder %v154, 64
    %vm156 = vcmp.lt.s32.totalorder %v154, 96
    %vm157 = vmand %vm155, %vm156
    %v158 = vsel %vm157, 1.0, 0.5
    %v159 = vsel %vm157, 0.0, 0.5
    %v160 = vld [vmem:[#allocation2] sm:$0xff]
    %v161 = vadd.f32 %v160, 0.0
    %v162 = vmul.f32 %v161, %v158
    %v163 = vtanh.pop %v162
    %v164 = vmul.f32 %v163, %v158
    %v165 = vadd.f32 %v164, %v159
    %v166 = vmul.f32 %v165, 0.0
    %168 = vrot.lane.b32.xlu0 %v165, 64
    %v169 = vpop.permute.xlu0 %168
    %v171 = vmul.f32 %v165, %v169
    %173 = vrot.lane.b32.xlu0 %v171, 32
    %v174 = vpop.permute.xlu0 %173
    %v176 = vadd.f32 %v166, %v174
    %v177 = vtanh.pop %v176
    %179 = vrot.lane.b32.xlu0 %v177, 64
    %v180 = vpop.permute.xlu0 %179
    %v182 = vmul.f32 %v165, %v180
    %184 = vrot.lane.b32.xlu0 %v182, 32
    %v185 = vpop.permute.xlu0 %184
    %vm187 = vcmask 261120
    %v188 = vsel %vm187, %v185, 0.0
    %vm189 = vcmask 523264
    %v191 = vsel %vm189, %v188, 0
    %193 = vmatprep.subr.mxu0 %v135
    %194 = vmatpush1.msra.mxu0 %v134
    %195 = vmatprep.subr.mxu0 %v137
    %196 = vmatpush1.msra.mxu0 %v136
    %197 = vmatprep.subr.mxu0 %v139
    %198 = vmatpush1.msra.mxu0 %v138
    %199 = vmatprep.subr.mxu0 %v141
    %200 = vmatpush1.msra.mxu0 %v140
    %201 = vmatprep.subr.mxu0 %v143
    %202 = vmatpush1.msra.mxu0 %v142
    %203 = vmatprep.subr.mxu0 %v145
    %204 = vmatpush1.msra.mxu0 %v144
    %205 = vmatprep.subr.mxu0 %v147
    %206 = vmatpush1.msra.mxu0 %v146
    %207 = vmatprep.subr.mxu0 %v149
    %208 = vmatpush1.msra.mxu0 %v148
    %209 = vmatprep.subr.mxu0 0.0
    %210 = vmatpush1.msra.mxu0 0.0
    %211 = vmatprep.subr.mxu0 0.0
    %212 = vmatpush1.msra.mxu0 0.0
    %213 = vmatprep.subr.mxu0 0.0
    %214 = vmatpush1.msra.mxu0 0.0
    %215 = vmatprep.subr.mxu0 0.0
    %216 = vmatpush1.msra.mxu0 0.0
    %217 = vmatprep.subr.mxu0 0.0
    %218 = vmatpush1.msra.mxu0 0.0
    %219 = vmatprep.subr.mxu0 0.0
    %220 = vmatpush1.msra.mxu0 0.0
    %221 = vmatprep.subr.mxu0 0.0
    %222 = vmatpush1.msra.mxu0 0.0
    %223 = vmatprep.subr.mxu0 0.0
    %224 = vmatpush1.msra.mxu0 0.0
    %225 = vmatprep.subr.mxu0 0.0
    %226 = vmatpush1.msra.mxu0 0.0
    %227 = vmatprep.subr.mxu0 0.0
    %228 = vmatpush1.msra.mxu0 0.0
    %229 = vmatprep.subr.mxu0 0.0
    %230 = vmatpush1.msra.mxu0 0.0
    %231 = vmatprep.subr.mxu0 0.0
    %232 = vmatpush1.msra.mxu0 0.0
    %233 = vmatprep.subr.mxu0 0.0
    %234 = vmatpush1.msra.mxu0 0.0
    %235 = vmatprep.subr.mxu0 0.0
    %236 = vmatpush1.msra.mxu0 0.0
    %237 = vmatprep.subr.mxu0 0.0
    %238 = vmatpush1.msra.mxu0 0.0
    %239 = vmatprep.subr.mxu0 0.0
    %240 = vmatpush1.msra.mxu0 0.0
    %241 = vmatprep.subr.mxu0 0.0
    %242 = vmatpush1.msra.mxu0 0.0
    %243 = vmatprep.subr.mxu0 0.0
    %244 = vmatpush1.msra.mxu0 0.0
    %245 = vmatprep.subr.mxu0 0.0
    %246 = vmatpush1.msra.mxu0 0.0
    %247 = vmatprep.subr.mxu0 0.0
    %248 = vmatpush1.msra.mxu0 0.0
    %249 = vmatprep.subr.mxu0 0.0
    %250 = vmatpush1.msra.mxu0 0.0
    %251 = vmatprep.subr.mxu0 0.0
    %252 = vmatpush1.msra.mxu0 0.0
    %253 = vmatprep.subr.mxu0 0.0
    %254 = vmatpush1.msra.mxu0 0.0
    %255 = vmatprep.subr.mxu0 0.0
    %256 = vmatpush1.msra.mxu0 0.0
    %257 = vmatprep.mubr.f32.mxu0 0.0
    %258 = vmatmul.mubr.f32.gmra.mrb[0].mxu0 %v191
    %v259 = vpop.f32.mrb[0].mxu0
    %v260 = vadd.f32 0.0, %v259
    %v261 = vpop.f32.mrb[0].mxu0
    %v262 = vadd.f32 0.0, %v261
    %263 = vdwg.mxu0
    %v265 = vlaneseq
    %v266 = vshrl.u32 %v265, 7
    %v267 = vsub.s32 0, %v266
    %v268 = vrot.slane %v150, %v267
    %v270 = vadd.f32 %v260, %v268
    %v271 = vmul.f32 %v270, %v158
    %v272 = vtanh.pop %v271
    %v273 = vmul.f32 %v272, %v158
    %v274 = vadd.f32 %v273, %v159
    %v275 = vmul.f32 %v274, 0.0
    %277 = vrot.lane.b32.xlu0 %v274, 64
    %v278 = vpop.permute.xlu0 %277
    %v280 = vmul.f32 %v274, %v278
    %282 = vrot.lane.b32.xlu0 %v280, 32
    %v283 = vpop.permute.xlu0 %282
    %v285 = vadd.f32 %v275, %v283
    %v286 = vtanh.pop %v285
    %288 = vrot.lane.b32.xlu0 %v286, 64
    %v289 = vpop.permute.xlu0 %288
    %v291 = vmul.f32 %v274, %v289
    %vm292 = vcmp.eq.s32.totalorder %v152, 0
    %v293 = vsel %vm292, 1, 0
    %294 = vset.pattern.permute.xlu0 0
    %295 = vperm.xlu0 %294, %v293
    %v296 = vpop.permute.xlu0 %295
    %vm297 = vcmp.eq.s32.totalorder %v296, 1
    %v298 = vsel %vm297, %v291, 0.0
    %s299 = scalar_lea.vmem [#allocation2], 8
    %v300 = vld [vmem:[%s299] sm:$0xff]
    %v301 = vadd.f32 %v300, %v262
    %v302 = vmul.f32 %v301, %v158
    %v303 = vtanh.pop %v302
    %v304 = vmul.f32 %v303, %v158
    %v305 = vadd.f32 %v304, %v159
    %v306 = vmul.f32 %v305, %v176
    %308 = vrot.lane.b32.xlu0 %v305, 64
    %v309 = vpop.permute.xlu0 %308
    %v311 = vmul.f32 %v305, %v309
    %313 = vrot.lane.b32.xlu0 %v311, 32
    %v314 = vpop.permute.xlu0 %313
    %v316 = vadd.f32 %v306, %v314
    %v317 = vtanh.pop %v316
    %319 = vrot.lane.b32.xlu0 %v317, 64
    %v320 = vpop.permute.xlu0 %319
    %v322 = vmul.f32 %v305, %v320
    %324 = vrot.lane.b32.xlu0 %v322, 32
    %v325 = vpop.permute.xlu0 %324
    %328 = vrot.lane.b32.xlu0 %v291, 64
    %v329 = vpop.permute.xlu0 %328
    %v331 = vsel %vm187, %v325, %v329
    %v333 = vsel %vm189, %v331, 0
    %335 = vmatprep.subr.mxu0 %v135
    %336 = vmatpush1.msra.mxu0 %v134
    %337 = vmatprep.subr.mxu0 %v137
    %338 = vmatpush1.msra.mxu0 %v136
    %339 = vmatprep.subr.mxu0 %v139
    %340 = vmatpush1.msra.mxu0 %v138
    %341 = vmatprep.subr.mxu0 %v141
    %342 = vmatpush1.msra.mxu0 %v140
    %343 = vmatprep.subr.mxu0 %v143
    %344 = vmatpush1.msra.mxu0 %v142
    %345 = vmatprep.subr.mxu0 %v145
    %346 = vmatpush1.msra.mxu0 %v144
    %347 = vmatprep.subr.mxu0 %v147
    %348 = vmatpush1.msra.mxu0 %v146
    %349 = vmatprep.subr.mxu0 %v149
    %350 = vmatpush1.msra.mxu0 %v148
    %351 = vmatprep.subr.mxu0 0.0
    %352 = vmatpush1.msra.mxu0 0.0
    %353 = vmatprep.subr.mxu0 0.0
    %354 = vmatpush1.msra.mxu0 0.0
    %355 = vmatprep.subr.mxu0 0.0
    %356 = vmatpush1.msra.mxu0 0.0
    %357 = vmatprep.subr.mxu0 0.0
    %358 = vmatpush1.msra.mxu0 0.0
    %359 = vmatprep.subr.mxu0 0.0
    %360 = vmatpush1.msra.mxu0 0.0
    %361 = vmatprep.subr.mxu0 0.0
    %362 = vmatpush1.msra.mxu0 0.0
    %363 = vmatprep.subr.mxu0 0.0
    %364 = vmatpush1.msra.mxu0 0.0
    %365 = vmatprep.subr.mxu0 0.0
    %366 = vmatpush1.msra.mxu0 0.0
    %367 = vmatprep.subr.mxu0 0.0
    %368 = vmatpush1.msra.mxu0 0.0
    %369 = vmatprep.subr.mxu0 0.0
    %370 = vmatpush1.msra.mxu0 0.0
    %371 = vmatprep.subr.mxu0 0.0
    %372 = vmatpush1.msra.mxu0 0.0
    %373 = vmatprep.subr.mxu0 0.0
    %374 = vmatpush1.msra.mxu0 0.0
    %375 = vmatprep.subr.mxu0 0.0
    %376 = vmatpush1.msra.mxu0 0.0
    %377 = vmatprep.subr.mxu0 0.0
    %378 = vmatpush1.msra.mxu0 0.0
    %379 = vmatprep.subr.mxu0 0.0
    %380 = vmatpush1.msra.mxu0 0.0
    %381 = vmatprep.subr.mxu0 0.0
    %382 = vmatpush1.msra.mxu0 0.0
    %383 = vmatprep.subr.mxu0 0.0
    %384 = vmatpush1.msra.mxu0 0.0
    %385 = vmatprep.subr.mxu0 0.0
    %386 = vmatpush1.msra.mxu0 0.0
    %387 = vmatprep.subr.mxu0 0.0
    %388 = vmatpush1.msra.mxu0 0.0
    %389 = vmatprep.subr.mxu0 0.0
    %390 = vmatpush1.msra.mxu0 0.0
    %391 = vmatprep.subr.mxu0 0.0
    %392 = vmatpush1.msra.mxu0 0.0
    %393 = vmatprep.subr.mxu0 0.0
    %394 = vmatpush1.msra.mxu0 0.0
    %395 = vmatprep.subr.mxu0 0.0
    %396 = vmatpush1.msra.mxu0 0.0
    %397 = vmatprep.subr.mxu0 0.0
    %398 = vmatpush1.msra.mxu0 0.0
    %399 = vmatprep.mubr.f32.mxu0 0.0
    %400 = vmatmul.mubr.f32.gmra.mrb[0].mxu0 %v333
    %v401 = vpop.f32.mrb[0].mxu0
    %v402 = vadd.f32 0.0, %v401
    %v403 = vpop.f32.mrb[0].mxu0
    %v404 = vadd.f32 0.0, %v403
    %405 = vdwg.mxu0
    %v406 = vadd.f32 %v402, %v268
    %v407 = vmul.f32 %v406, %v158
    %v408 = vtanh.pop %v407
    %v409 = vmul.f32 %v408, %v158
    %v410 = vadd.f32 %v409, %v159
    %v411 = vmul.f32 %v410, %v285
    %413 = vrot.lane.b32.xlu0 %v410, 64
    %v414 = vpop.permute.xlu0 %413
    %v416 = vmul.f32 %v410, %v414
    %418 = vrot.lane.b32.xlu0 %v416, 32
    %v419 = vpop.permute.xlu0 %418
    %v421 = vadd.f32 %v411, %v419
    %v422 = vtanh.pop %v421
    %424 = vrot.lane.b32.xlu0 %v422, 64
    %v425 = vpop.permute.xlu0 %424
    %v427 = vmul.f32 %v410, %v425
    %vm428 = vcmp.eq.s32.totalorder %v152, 1
    %v429 = vsel %vm428, 1, 0
    %430 = vset.pattern.permute.xlu0 0
    %431 = vperm.xlu0 %430, %v429
    %v432 = vpop.permute.xlu0 %431
    %vm433 = vcmp.eq.s32.totalorder %v432, 1
    %v434 = vsel %vm433, %v427, %v298
    %s435 = scalar_lea.vmem [#allocation2], 16
    %v436 = vld [vmem:[%s435] sm:$0xff]
    %v437 = vadd.f32 %v436, %v404
    %v438 = vmul.f32 %v437, %v158
    %v439 = vtanh.pop %v438
    %v440 = vmul.f32 %v439, %v158
    %v441 = vadd.f32 %v440, %v159
    %v442 = vmul.f32 %v441, %v316
    %444 = vrot.lane.b32.xlu0 %v441, 64
    %v445 = vpop.permute.xlu0 %444
    %v447 = vmul.f32 %v441, %v445
    %449 = vrot.lane.b32.xlu0 %v447, 32
    %v450 = vpop.permute.xlu0 %449
    %v452 = vadd.f32 %v442, %v450
    %v453 = vtanh.pop %v452
    %455 = vrot.lane.b32.xlu0 %v453, 64
    %v456 = vpop.permute.xlu0 %455
    %v458 = vmul.f32 %v441, %v456
    %460 = vrot.lane.b32.xlu0 %v458, 32
    %v461 = vpop.permute.xlu0 %460
    %464 = vrot.lane.b32.xlu0 %v427, 64
    %v465 = vpop.permute.xlu0 %464
    %v467 = vsel %vm187, %v461, %v465
    %v469 = vsel %vm189, %v467, 0
    %471 = vmatprep.subr.mxu0 %v135
    %472 = vmatpush1.msra.mxu0 %v134
    %473 = vmatprep.subr.mxu0 %v137
    %474 = vmatpush1.msra.mxu0 %v136
    %475 = vmatprep.subr.mxu0 %v139
    %476 = vmatpush1.msra.mxu0 %v138
    %477 = vmatprep.subr.mxu0 %v141
    %478 = vmatpush1.msra.mxu0 %v140
    %479 = vmatprep.subr.mxu0 %v143
    %480 = vmatpush1.msra.mxu0 %v142
    %481 = vmatprep.subr.mxu0 %v145
    %482 = vmatpush1.msra.mxu0 %v144
    %483 = vmatprep.subr.mxu0 %v147
    %484 = vmatpush1.msra.mxu0 %v146
    %485 = vmatprep.subr.mxu0 %v149
    %486 = vmatpush1.msra.mxu0 %v148
    %487 = vmatprep.subr.mxu0 0.0
    %488 = vmatpush1.msra.mxu0 0.0
    %489 = vmatprep.subr.mxu0 0.0
    %490 = vmatpush1.msra.mxu0 0.0
    %491 = vmatprep.subr.mxu0 0.0
    %492 = vmatpush1.msra.mxu0 0.0
    %493 = vmatprep.subr.mxu0 0.0
    %494 = vmatpush1.msra.mxu0 0.0
    %495 = vmatprep.subr.mxu0 0.0
    %496 = vmatpush1.msra.mxu0 0.0
    %497 = vmatprep.subr.mxu0 0.0
    %498 = vmatpush1.msra.mxu0 0.0
    %499 = vmatprep.subr.mxu0 0.0
    %500 = vmatpush1.msra.mxu0 0.0
    %501 = vmatprep.subr.mxu0 0.0
    %502 = vmatpush1.msra.mxu0 0.0
    %503 = vmatprep.subr.mxu0 0.0
    %504 = vmatpush1.msra.mxu0 0.0
    %505 = vmatprep.subr.mxu0 0.0
    %506 = vmatpush1.msra.mxu0 0.0
    %507 = vmatprep.subr.mxu0 0.0
    %508 = vmatpush1.msra.mxu0 0.0
    %509 = vmatprep.subr.mxu0 0.0
    %510 = vmatpush1.msra.mxu0 0.0
    %511 = vmatprep.subr.mxu0 0.0
    %512 = vmatpush1.msra.mxu0 0.0
    %513 = vmatprep.subr.mxu0 0.0
    %514 = vmatpush1.msra.mxu0 0.0
    %515 = vmatprep.subr.mxu0 0.0
    %516 = vmatpush1.msra.mxu0 0.0
    %517 = vmatprep.subr.mxu0 0.0
    %518 = vmatpush1.msra.mxu0 0.0
    %519 = vmatprep.subr.mxu0 0.0
    %520 = vmatpush1.msra.mxu0 0.0
    %521 = vmatprep.subr.mxu0 0.0
    %522 = vmatpush1.msra.mxu0 0.0
    %523 = vmatprep.subr.mxu0 0.0
    %524 = vmatpush1.msra.mxu0 0.0
    %525 = vmatprep.subr.mxu0 0.0
    %526 = vmatpush1.msra.mxu0 0.0
    %527 = vmatprep.subr.mxu0 0.0
    %528 = vmatpush1.msra.mxu0 0.0
    %529 = vmatprep.subr.mxu0 0.0
    %530 = vmatpush1.msra.mxu0 0.0
    %531 = vmatprep.subr.mxu0 0.0
    %532 = vmatpush1.msra.mxu0 0.0
    %533 = vmatprep.subr.mxu0 0.0
    %534 = vmatpush1.msra.mxu0 0.0
    %535 = vmatprep.mubr.f32.mxu0 0.0
    %536 = vmatmul.mubr.f32.gmra.mrb[0].mxu0 %v469
    %v537 = vpop.f32.mrb[0].mxu0
    %v538 = vadd.f32 0.0, %v537
    %v539 = vpop.f32.mrb[0].mxu0
    %v540 = vadd.f32 0.0, %v539
    %541 = vdwg.mxu0
    %v542 = vadd.f32 %v538, %v268
    %v543 = vmul.f32 %v542, %v158
    %v544 = vtanh.pop %v543
    %v545 = vmul.f32 %v544, %v158
    %v546 = vadd.f32 %v545, %v159
    %v547 = vmul.f32 %v546, %v421
    %549 = vrot.lane.b32.xlu0 %v546, 64
    %v550 = vpop.permute.xlu0 %549
    %v552 = vmul.f32 %v546, %v550
    %554 = vrot.lane.b32.xlu0 %v552, 32
    %v555 = vpop.permute.xlu0 %554
    %v557 = vadd.f32 %v547, %v555
    %v558 = vtanh.pop %v557
    %560 = vrot.lane.b32.xlu0 %v558, 64
    %v561 = vpop.permute.xlu0 %560
    %v563 = vmul.f32 %v546, %v561
    %vm564 = vcmp.eq.s32.totalorder %v152, 2
    %v565 = vsel %vm564, 1, 0
    %566 = vset.pattern.permute.xlu0 0
    %567 = vperm.xlu0 %566, %v565
    %v568 = vpop.permute.xlu0 %567
    %vm569 = vcmp.eq.s32.totalorder %v568, 1
    %v570 = vsel %vm569, %v563, %v434
    %s571 = scalar_lea.vmem [#allocation2], 24
    %v572 = vld [vmem:[%s571] sm:$0xff]
    %v573 = vadd.f32 %v572, %v540
    %v574 = vmul.f32 %v573, %v158
    %v575 = vtanh.pop %v574
    %v576 = vmul.f32 %v575, %v158
    %v577 = vadd.f32 %v576, %v159
    %v578 = vmul.f32 %v577, %v452
    %580 = vrot.lane.b32.xlu0 %v577, 64
    %v581 = vpop.permute.xlu0 %580
    %v583 = vmul.f32 %v577, %v581
    %585 = vrot.lane.b32.xlu0 %v583, 32
    %v586 = vpop.permute.xlu0 %585
    %v588 = vadd.f32 %v578, %v586
    %v589 = vtanh.pop %v588
    %591 = vrot.lane.b32.xlu0 %v589, 64
    %v592 = vpop.permute.xlu0 %591
    %v594 = vmul.f32 %v577, %v592
    %596 = vrot.lane.b32.xlu0 %v594, 32
    %v597 = vpop.permute.xlu0 %596
    %600 = vrot.lane.b32.xlu0 %v563, 64
    %v601 = vpop.permute.xlu0 %600
    %v603 = vsel %vm187, %v597, %v601
    %v605 = vsel %vm189, %v603, 0
    %607 = vmatprep.subr.mxu0 %v135
    %608 = vmatpush1.msra.mxu0 %v134
    %609 = vmatprep.subr.mxu0 %v137
    %610 = vmatpush1.msra.mxu0 %v136
    %611 = vmatprep.subr.mxu0 %v139
    %612 = vmatpush1.msra.mxu0 %v138
    %613 = vmatprep.subr.mxu0 %v141
    %614 = vmatpush1.msra.mxu0 %v140
    %615 = vmatprep.subr.mxu0 %v143
    %616 = vmatpush1.msra.mxu0 %v142
    %617 = vmatprep.subr.mxu0 %v145
    %618 = vmatpush1.msra.mxu0 %v144
    %619 = vmatprep.subr.mxu0 %v147
    %620 = vmatpush1.msra.mxu0 %v146
    %621 = vmatprep.subr.mxu0 %v149
    %622 = vmatpush1.msra.mxu0 %v148
    %623 = vmatprep.subr.mxu0 0.0
    %624 = vmatpush1.msra.mxu0 0.0
    %625 = vmatprep.subr.mxu0 0.0
    %626 = vmatpush1.msra.mxu0 0.0
    %627 = vmatprep.subr.mxu0 0.0
    %628 = vmatpush1.msra.mxu0 0.0
    %629 = vmatprep.subr.mxu0 0.0
    %630 = vmatpush1.msra.mxu0 0.0
    %631 = vmatprep.subr.mxu0 0.0
    %632 = vmatpush1.msra.mxu0 0.0
    %633 = vmatprep.subr.mxu0 0.0
    %634 = vmatpush1.msra.mxu0 0.0
    %635 = vmatprep.subr.mxu0 0.0
    %636 = vmatpush1.msra.mxu0 0.0
    %637 = vmatprep.subr.mxu0 0.0
    %638 = vmatpush1.msra.mxu0 0.0
    %639 = vmatprep.subr.mxu0 0.0
    %640 = vmatpush1.msra.mxu0 0.0
    %641 = vmatprep.subr.mxu0 0.0
    %642 = vmatpush1.msra.mxu0 0.0
    %643 = vmatprep.subr.mxu0 0.0
    %644 = vmatpush1.msra.mxu0 0.0
    %645 = vmatprep.subr.mxu0 0.0
    %646 = vmatpush1.msra.mxu0 0.0
    %647 = vmatprep.subr.mxu0 0.0
    %648 = vmatpush1.msra.mxu0 0.0
    %649 = vmatprep.subr.mxu0 0.0
    %650 = vmatpush1.msra.mxu0 0.0
    %651 = vmatprep.subr.mxu0 0.0
    %652 = vmatpush1.msra.mxu0 0.0
    %653 = vmatprep.subr.mxu0 0.0
    %654 = vmatpush1.msra.mxu0 0.0
    %655 = vmatprep.subr.mxu0 0.0
    %656 = vmatpush1.msra.mxu0 0.0
    %657 = vmatprep.subr.mxu0 0.0
    %658 = vmatpush1.msra.mxu0 0.0
    %659 = vmatprep.subr.mxu0 0.0
    %660 = vmatpush1.msra.mxu0 0.0
    %661 = vmatprep.subr.mxu0 0.0
    %662 = vmatpush1.msra.mxu0 0.0
    %663 = vmatprep.subr.mxu0 0.0
    %664 = vmatpush1.msra.mxu0 0.0
    %665 = vmatprep.subr.mxu0 0.0
    %666 = vmatpush1.msra.mxu0 0.0
    %667 = vmatprep.subr.mxu0 0.0
    %668 = vmatpush1.msra.mxu0 0.0
    %669 = vmatprep.subr.mxu0 0.0
    %670 = vmatpush1.msra.mxu0 0.0
    %671 = vmatprep.mubr.f32.mxu0 0.0
    %672 = vmatmul.mubr.f32.gmra.mrb[0].mxu0 %v605
    %v673 = vpop.f32.mrb[0].mxu0
    %v674 = vadd.f32 0.0, %v673
    %v675 = vpop.f32.mrb[0].mxu0
    %v676 = vadd.f32 0.0, %v675
    %677 = vdwg.mxu0
    %v678 = vadd.f32 %v674, %v268
    %v679 = vmul.f32 %v678, %v158
    %v680 = vtanh.pop %v679
    %v681 = vmul.f32 %v680, %v158
    %v682 = vadd.f32 %v681, %v159
    %v683 = vmul.f32 %v682, %v557
    %685 = vrot.lane.b32.xlu0 %v682, 64
    %v686 = vpop.permute.xlu0 %685
    %v688 = vmul.f32 %v682, %v686
    %690 = vrot.lane.b32.xlu0 %v688, 32
    %v691 = vpop.permute.xlu0 %690
    %v693 = vadd.f32 %v683, %v691
    %v694 = vtanh.pop %v693
    %696 = vrot.lane.b32.xlu0 %v694, 64
    %v697 = vpop.permute.xlu0 %696
    %v699 = vmul.f32 %v682, %v697
    %vm700 = vcmp.eq.s32.totalorder %v152, 3
    %v701 = vsel %vm700, 1, 0
    %702 = vset.pattern.permute.xlu0 0
    %703 = vperm.xlu0 %702, %v701
    %v704 = vpop.permute.xlu0 %703
    %vm705 = vcmp.eq.s32.totalorder %v704, 1
    %v706 = vsel %vm705, %v699, %v570
    %s707 = scalar_lea.vmem [#allocation2], 32
    %v708 = vld [vmem:[%s707] sm:$0xff]
    %v709 = vadd.f32 %v708, %v676
    %v710 = vmul.f32 %v709, %v158
    %v711 = vtanh.pop %v710
    %v712 = vmul.f32 %v711, %v158
    %v713 = vadd.f32 %v712, %v159
    %v714 = vmul.f32 %v713, %v588
    %716 = vrot.lane.b32.xlu0 %v713, 64
    %v717 = vpop.permute.xlu0 %716
    %v719 = vmul.f32 %v713, %v717
    %721 = vrot.lane.b32.xlu0 %v719, 32
    %v722 = vpop.permute.xlu0 %721
    %v724 = vadd.f32 %v714, %v722
    %v725 = vtanh.pop %v724
    %727 = vrot.lane.b32.xlu0 %v725, 64
    %v728 = vpop.permute.xlu0 %727
    %v730 = vmul.f32 %v713, %v728
    %732 = vrot.lane.b32.xlu0 %v730, 32
    %v733 = vpop.permute.xlu0 %732
    %736 = vrot.lane.b32.xlu0 %v699, 64
    %v737 = vpop.permute.xlu0 %736
    %v739 = vsel %vm187, %v733, %v737
    %v741 = vsel %vm189, %v739, 0
    %743 = vmatprep.subr.mxu0 %v135
    %744 = vmatpush1.msra.mxu0 %v134
    %745 = vmatprep.subr.mxu0 %v137
    %746 = vmatpush1.msra.mxu0 %v136
    %747 = vmatprep.subr.mxu0 %v139
    %748 = vmatpush1.msra.mxu0 %v138
    %749 = vmatprep.subr.mxu0 %v141
    %750 = vmatpush1.msra.mxu0 %v140
    %751 = vmatprep.subr.mxu0 %v143
    %752 = vmatpush1.msra.mxu0 %v142
    %753 = vmatprep.subr.mxu0 %v145
    %754 = vmatpush1.msra.mxu0 %v144
    %755 = vmatprep.subr.mxu0 %v147
    %756 = vmatpush1.msra.mxu0 %v146
    %757 = vmatprep.subr.mxu0 %v149
    %758 = vmatpush1.msra.mxu0 %v148
    %759 = vmatprep.subr.mxu0 0.0
    %760 = vmatpush1.msra.mxu0 0.0
    %761 = vmatprep.subr.mxu0 0.0
    %762 = vmatpush1.msra.mxu0 0.0
    %763 = vmatprep.subr.mxu0 0.0
    %764 = vmatpush1.msra.mxu0 0.0
    %765 = vmatprep.subr.mxu0 0.0
    %766 = vmatpush1.msra.mxu0 0.0
    %767 = vmatprep.subr.mxu0 0.0
    %768 = vmatpush1.msra.mxu0 0.0
    %769 = vmatprep.subr.mxu0 0.0
    %770 = vmatpush1.msra.mxu0 0.0
    %771 = vmatprep.subr.mxu0 0.0
    %772 = vmatpush1.msra.mxu0 0.0
    %773 = vmatprep.subr.mxu0 0.0
    %774 = vmatpush1.msra.mxu0 0.0
    %775 = vmatprep.subr.mxu0 0.0
    %776 = vmatpush1.msra.mxu0 0.0
    %777 = vmatprep.subr.mxu0 0.0
    %778 = vmatpush1.msra.mxu0 0.0
    %779 = vmatprep.subr.mxu0 0.0
    %780 = vmatpush1.msra.mxu0 0.0
    %781 = vmatprep.subr.mxu0 0.0
    %782 = vmatpush1.msra.mxu0 0.0
    %783 = vmatprep.subr.mxu0 0.0
    %784 = vmatpush1.msra.mxu0 0.0
    %785 = vmatprep.subr.mxu0 0.0
    %786 = vmatpush1.msra.mxu0 0.0
    %787 = vmatprep.subr.mxu0 0.0
    %788 = vmatpush1.msra.mxu0 0.0
    %789 = vmatprep.subr.mxu0 0.0
    %790 = vmatpush1.msra.mxu0 0.0
    %791 = vmatprep.subr.mxu0 0.0
    %792 = vmatpush1.msra.mxu0 0.0
    %793 = vmatprep.subr.mxu0 0.0
    %794 = vmatpush1.msra.mxu0 0.0
    %795 = vmatprep.subr.mxu0 0.0
    %796 = vmatpush1.msra.mxu0 0.0
    %797 = vmatprep.subr.mxu0 0.0
    %798 = vmatpush1.msra.mxu0 0.0
    %799 = vmatprep.subr.mxu0 0.0
    %800 = vmatpush1.msra.mxu0 0.0
    %801 = vmatprep.subr.mxu0 0.0
    %802 = vmatpush1.msra.mxu0 0.0
    %803 = vmatprep.subr.mxu0 0.0
    %804 = vmatpush1.msra.mxu0 0.0
    %805 = vmatprep.subr.mxu0 0.0
    %806 = vmatpush1.msra.mxu0 0.0
    %807 = vmatprep.mubr.f32.mxu0 0.0
    %808 = vmatmul.mubr.f32.gmra.mrb[0].mxu0 %v741
    %v809 = vpop.f32.mrb[0].mxu0
    %v810 = vadd.f32 0.0, %v809
    %v811 = vpop.f32.mrb[0].mxu0
    %v812 = vadd.f32 0.0, %v811
    %813 = vdwg.mxu0
    %v814 = vadd.f32 %v810, %v268
    %v815 = vmul.f32 %v814, %v158
    %v816 = vtanh.pop %v815
    %v817 = vmul.f32 %v816, %v158
    %v818 = vadd.f32 %v817, %v159
    %v819 = vmul.f32 %v818, %v693
    %821 = vrot.lane.b32.xlu0 %v818, 64
    %v822 = vpop.permute.xlu0 %821
    %v824 = vmul.f32 %v818, %v822
    %826 = vrot.lane.b32.xlu0 %v824, 32
    %v827 = vpop.permute.xlu0 %826
    %v829 = vadd.f32 %v819, %v827
    %v830 = vtanh.pop %v829
    %832 = vrot.lane.b32.xlu0 %v830, 64
    %v833 = vpop.permute.xlu0 %832
    %v835 = vmul.f32 %v818, %v833
    %vm836 = vcmp.eq.s32.totalorder %v152, 4
    %v837 = vsel %vm836, 1, 0
    %838 = vset.pattern.permute.xlu0 0
    %839 = vperm.xlu0 %838, %v837
    %v840 = vpop.permute.xlu0 %839
    %vm841 = vcmp.eq.s32.totalorder %v840, 1
    %v842 = vsel %vm841, %v835, %v706
    %s843 = scalar_lea.vmem [#allocation2], 40
    %v844 = vld [vmem:[%s843] sm:$0xff]
    %v845 = vadd.f32 %v844, %v812
    %v846 = vmul.f32 %v845, %v158
    %v847 = vtanh.pop %v846
    %v848 = vmul.f32 %v847, %v158
    %v849 = vadd.f32 %v848, %v159
    %v850 = vmul.f32 %v849, %v724
    %852 = vrot.lane.b32.xlu0 %v849, 64
    %v853 = vpop.permute.xlu0 %852
    %v855 = vmul.f32 %v849, %v853
    %857 = vrot.lane.b32.xlu0 %v855, 32
    %v858 = vpop.permute.xlu0 %857
    %v860 = vadd.f32 %v850, %v858
    %v861 = vtanh.pop %v860
    %863 = vrot.lane.b32.xlu0 %v861, 64
    %v864 = vpop.permute.xlu0 %863
    %v866 = vmul.f32 %v849, %v864
    %868 = vrot.lane.b32.xlu0 %v866, 32
    %v869 = vpop.permute.xlu0 %868
    %872 = vrot.lane.b32.xlu0 %v835, 64
    %v873 = vpop.permute.xlu0 %872
    %v875 = vsel %vm187, %v869, %v873
    %v877 = vsel %vm189, %v875, 0
    %879 = vmatprep.subr.mxu0 %v135
    %880 = vmatpush1.msra.mxu0 %v134
    %881 = vmatprep.subr.mxu0 %v137
    %882 = vmatpush1.msra.mxu0 %v136
    %883 = vmatprep.subr.mxu0 %v139
    %884 = vmatpush1.msra.mxu0 %v138
    %885 = vmatprep.subr.mxu0 %v141
    %886 = vmatpush1.msra.mxu0 %v140
    %887 = vmatprep.subr.mxu0 %v143
    %888 = vmatpush1.msra.mxu0 %v142
    %889 = vmatprep.subr.mxu0 %v145
    %890 = vmatpush1.msra.mxu0 %v144
    %891 = vmatprep.subr.mxu0 %v147
    %892 = vmatpush1.msra.mxu0 %v146
    %893 = vmatprep.subr.mxu0 %v149
    %894 = vmatpush1.msra.mxu0 %v148
    %895 = vmatprep.subr.mxu0 0.0
    %896 = vmatpush1.msra.mxu0 0.0
    %897 = vmatprep.subr.mxu0 0.0
    %898 = vmatpush1.msra.mxu0 0.0
    %899 = vmatprep.subr.mxu0 0.0
    %900 = vmatpush1.msra.mxu0 0.0
    %901 = vmatprep.subr.mxu0 0.0
    %902 = vmatpush1.msra.mxu0 0.0
    %903 = vmatprep.subr.mxu0 0.0
    %904 = vmatpush1.msra.mxu0 0.0
    %905 = vmatprep.subr.mxu0 0.0
    %906 = vmatpush1.msra.mxu0 0.0
    %907 = vmatprep.subr.mxu0 0.0
    %908 = vmatpush1.msra.mxu0 0.0
    %909 = vmatprep.subr.mxu0 0.0
    %910 = vmatpush1.msra.mxu0 0.0
    %911 = vmatprep.subr.mxu0 0.0
    %912 = vmatpush1.msra.mxu0 0.0
    %913 = vmatprep.subr.mxu0 0.0
    %914 = vmatpush1.msra.mxu0 0.0
    %915 = vmatprep.subr.mxu0 0.0
    %916 = vmatpush1.msra.mxu0 0.0
    %917 = vmatprep.subr.mxu0 0.0
    %918 = vmatpush1.msra.mxu0 0.0
    %919 = vmatprep.subr.mxu0 0.0
    %920 = vmatpush1.msra.mxu0 0.0
    %921 = vmatprep.subr.mxu0 0.0
    %922 = vmatpush1.msra.mxu0 0.0
    %923 = vmatprep.subr.mxu0 0.0
    %924 = vmatpush1.msra.mxu0 0.0
    %925 = vmatprep.subr.mxu0 0.0
    %926 = vmatpush1.msra.mxu0 0.0
    %927 = vmatprep.subr.mxu0 0.0
    %928 = vmatpush1.msra.mxu0 0.0
    %929 = vmatprep.subr.mxu0 0.0
    %930 = vmatpush1.msra.mxu0 0.0
    %931 = vmatprep.subr.mxu0 0.0
    %932 = vmatpush1.msra.mxu0 0.0
    %933 = vmatprep.subr.mxu0 0.0
    %934 = vmatpush1.msra.mxu0 0.0
    %935 = vmatprep.subr.mxu0 0.0
    %936 = vmatpush1.msra.mxu0 0.0
    %937 = vmatprep.subr.mxu0 0.0
    %938 = vmatpush1.msra.mxu0 0.0
    %939 = vmatprep.subr.mxu0 0.0
    %940 = vmatpush1.msra.mxu0 0.0
    %941 = vmatprep.subr.mxu0 0.0
    %942 = vmatpush1.msra.mxu0 0.0
    %943 = vmatprep.mubr.f32.mxu0 0.0
    %944 = vmatmul.mubr.f32.gmra.mrb[0].mxu0 %v877
    %v945 = vpop.f32.mrb[0].mxu0
    %v946 = vadd.f32 0.0, %v945
    %v947 = vpop.f32.mrb[0].mxu0
    %v948 = vadd.f32 0.0, %v947
    %949 = vdwg.mxu0
    %v950 = vadd.f32 %v946, %v268
    %v951 = vmul.f32 %v950, %v158
    %v952 = vtanh.pop %v951
    %v953 = vmul.f32 %v952, %v158
    %v954 = vadd.f32 %v953, %v159
    %v955 = vmul.f32 %v954, %v829
    %957 = vrot.lane.b32.xlu0 %v954, 64
    %v958 = vpop.permute.xlu0 %957
    %v960 = vmul.f32 %v954, %v958
    %962 = vrot.lane.b32.xlu0 %v960, 32
    %v963 = vpop.permute.xlu0 %962
    %v965 = vadd.f32 %v955, %v963
    %v966 = vtanh.pop %v965
    %968 = vrot.lane.b32.xlu0 %v966, 64
    %v969 = vpop.permute.xlu0 %968
    %v971 = vmul.f32 %v954, %v969
    %vm972 = vcmp.eq.s32.totalorder %v152, 5
    %v973 = vsel %vm972, 1, 0
    %974 = vset.pattern.permute.xlu0 0
    %975 = vperm.xlu0 %974, %v973
    %v976 = vpop.permute.xlu0 %975
    %vm977 = vcmp.eq.s32.totalorder %v976, 1
    %v978 = vsel %vm977, %v971, %v842
    %s979 = scalar_lea.vmem [#allocation2], 48
    %v980 = vld [vmem:[%s979] sm:$0xff]
    %v981 = vadd.f32 %v980, %v948
    %v982 = vmul.f32 %v981, %v158
    %v983 = vtanh.pop %v982
    %v984 = vmul.f32 %v983, %v158
    %v985 = vadd.f32 %v984, %v159
    %v986 = vmul.f32 %v985, %v860
    %988 = vrot.lane.b32.xlu0 %v985, 64
    %v989 = vpop.permute.xlu0 %988
    %v991 = vmul.f32 %v985, %v989
    %993 = vrot.lane.b32.xlu0 %v991, 32
    %v994 = vpop.permute.xlu0 %993
    %v996 = vadd.f32 %v986, %v994
    %v997 = vtanh.pop %v996
    %999 = vrot.lane.b32.xlu0 %v997, 64
    %v1000 = vpop.permute.xlu0 %999
    %v1002 = vmul.f32 %v985, %v1000
    %1004 = vrot.lane.b32.xlu0 %v1002, 32
    %v1005 = vpop.permute.xlu0 %1004
    %1008 = vrot.lane.b32.xlu0 %v971, 64
    %v1009 = vpop.permute.xlu0 %1008
    %v1011 = vsel %vm187, %v1005, %v1009
    %v1013 = vsel %vm189, %v1011, 0
    %1015 = vmatprep.subr.mxu0 %v135
    %1016 = vmatpush1.msra.mxu0 %v134
    %1017 = vmatprep.subr.mxu0 %v137
    %1018 = vmatpush1.msra.mxu0 %v136
    %1019 = vmatprep.subr.mxu0 %v139
    %1020 = vmatpush1.msra.mxu0 %v138
    %1021 = vmatprep.subr.mxu0 %v141
    %1022 = vmatpush1.msra.mxu0 %v140
    %1023 = vmatprep.subr.mxu0 %v143
    %1024 = vmatpush1.msra.mxu0 %v142
    %1025 = vmatprep.subr.mxu0 %v145
    %1026 = vmatpush1.msra.mxu0 %v144
    %1027 = vmatprep.subr.mxu0 %v147
    %1028 = vmatpush1.msra.mxu0 %v146
    %1029 = vmatprep.subr.mxu0 %v149
    %1030 = vmatpush1.msra.mxu0 %v148
    %1031 = vmatprep.subr.mxu0 0.0
    %1032 = vmatpush1.msra.mxu0 0.0
    %1033 = vmatprep.subr.mxu0 0.0
    %1034 = vmatpush1.msra.mxu0 0.0
    %1035 = vmatprep.subr.mxu0 0.0
    %1036 = vmatpush1.msra.mxu0 0.0
    %1037 = vmatprep.subr.mxu0 0.0
    %1038 = vmatpush1.msra.mxu0 0.0
    %1039 = vmatprep.subr.mxu0 0.0
    %1040 = vmatpush1.msra.mxu0 0.0
    %1041 = vmatprep.subr.mxu0 0.0
    %1042 = vmatpush1.msra.mxu0 0.0
    %1043 = vmatprep.subr.mxu0 0.0
    %1044 = vmatpush1.msra.mxu0 0.0
    %1045 = vmatprep.subr.mxu0 0.0
    %1046 = vmatpush1.msra.mxu0 0.0
    %1047 = vmatprep.subr.mxu0 0.0
    %1048 = vmatpush1.msra.mxu0 0.0
    %1049 = vmatprep.subr.mxu0 0.0
    %1050 = vmatpush1.msra.mxu0 0.0
    %1051 = vmatprep.subr.mxu0 0.0
    %1052 = vmatpush1.msra.mxu0 0.0
    %1053 = vmatprep.subr.mxu0 0.0
    %1054 = vmatpush1.msra.mxu0 0.0
    %1055 = vmatprep.subr.mxu0 0.0
    %1056 = vmatpush1.msra.mxu0 0.0
    %1057 = vmatprep.subr.mxu0 0.0
    %1058 = vmatpush1.msra.mxu0 0.0
    %1059 = vmatprep.subr.mxu0 0.0
    %1060 = vmatpush1.msra.mxu0 0.0
    %1061 = vmatprep.subr.mxu0 0.0
    %1062 = vmatpush1.msra.mxu0 0.0
    %1063 = vmatprep.subr.mxu0 0.0
    %1064 = vmatpush1.msra.mxu0 0.0
    %1065 = vmatprep.subr.mxu0 0.0
    %1066 = vmatpush1.msra.mxu0 0.0
    %1067 = vmatprep.subr.mxu0 0.0
    %1068 = vmatpush1.msra.mxu0 0.0
    %1069 = vmatprep.subr.mxu0 0.0
    %1070 = vmatpush1.msra.mxu0 0.0
    %1071 = vmatprep.subr.mxu0 0.0
    %1072 = vmatpush1.msra.mxu0 0.0
    %1073 = vmatprep.subr.mxu0 0.0
    %1074 = vmatpush1.msra.mxu0 0.0
    %1075 = vmatprep.subr.mxu0 0.0
    %1076 = vmatpush1.msra.mxu0 0.0
    %1077 = vmatprep.subr.mxu0 0.0
    %1078 = vmatpush1.msra.mxu0 0.0
    %1079 = vmatprep.mubr.f32.mxu0 0.0
    %1080 = vmatmul.mubr.f32.gmra.mrb[0].mxu0 %v1013
    %v1081 = vpop.f32.mrb[0].mxu0
    %v1082 = vadd.f32 0.0, %v1081
    %v1083 = vpop.f32.mrb[0].mxu0
    %v1084 = vadd.f32 0.0, %v1083
    %1085 = vdwg.mxu0
    %v1086 = vadd.f32 %v1082, %v268
    %v1087 = vmul.f32 %v1086, %v158
    %v1088 = vtanh.pop %v1087
    %v1089 = vmul.f32 %v1088, %v158
    %v1090 = vadd.f32 %v1089, %v159
    %v1091 = vmul.f32 %v1090, %v965
    %1093 = vrot.lane.b32.xlu0 %v1090, 64
    %v1094 = vpop.permute.xlu0 %1093
    %v1096 = vmul.f32 %v1090, %v1094
    %1098 = vrot.lane.b32.xlu0 %v1096, 32
    %v1099 = vpop.permute.xlu0 %1098
    %v1101 = vadd.f32 %v1091, %v1099
    %v1102 = vtanh.pop %v1101
    %1104 = vrot.lane.b32.xlu0 %v1102, 64
    %v1105 = vpop.permute.xlu0 %1104
    %v1107 = vmul.f32 %v1090, %v1105
    %vm1108 = vcmp.eq.s32.totalorder %v152, 6
    %v1109 = vsel %vm1108, 1, 0
    %1110 = vset.pattern.permute.xlu0 0
    %1111 = vperm.xlu0 %1110, %v1109
    %v1112 = vpop.permute.xlu0 %1111
    %vm1113 = vcmp.eq.s32.totalorder %v1112, 1
    %v1114 = vsel %vm1113, %v1107, %v978
    %s1115 = scalar_lea.vmem [#allocation2], 56
    %v1116 = vld [vmem:[%s1115] sm:$0xff]
    %v1117 = vadd.f32 %v1116, %v1084
    %v1118 = vmul.f32 %v1117, %v158
    %v1119 = vtanh.pop %v1118
    %v1120 = vmul.f32 %v1119, %v158
    %v1121 = vadd.f32 %v1120, %v159
    %v1122 = vmul.f32 %v1121, %v996
    %1124 = vrot.lane.b32.xlu0 %v1121, 64
    %v1125 = vpop.permute.xlu0 %1124
    %v1127 = vmul.f32 %v1121, %v1125
    %1129 = vrot.lane.b32.xlu0 %v1127, 32
    %v1130 = vpop.permute.xlu0 %1129
    %v1132 = vadd.f32 %v1122, %v1130
    %v1133 = vtanh.pop %v1132
    %1135 = vrot.lane.b32.xlu0 %v1133, 64
    %v1136 = vpop.permute.xlu0 %1135
    %v1138 = vmul.f32 %v1121, %v1136
    %1140 = vrot.lane.b32.xlu0 %v1138, 32
    %v1141 = vpop.permute.xlu0 %1140
    %1144 = vrot.lane.b32.xlu0 %v1107, 64
    %v1145 = vpop.permute.xlu0 %1144
    %v1147 = vsel %vm187, %v1141, %v1145
    %v1149 = vsel %vm189, %v1147, 0
    %1151 = vmatprep.subr.mxu0 %v135
    %1152 = vmatpush1.msra.mxu0 %v134
    %1153 = vmatprep.subr.mxu0 %v137
    %1154 = vmatpush1.msra.mxu0 %v136
    %1155 = vmatprep.subr.mxu0 %v139
    %1156 = vmatpush1.msra.mxu0 %v138
    %1157 = vmatprep.subr.mxu0 %v141
    %1158 = vmatpush1.msra.mxu0 %v140
    %1159 = vmatprep.subr.mxu0 %v143
    %1160 = vmatpush1.msra.mxu0 %v142
    %1161 = vmatprep.subr.mxu0 %v145
    %1162 = vmatpush1.msra.mxu0 %v144
    %1163 = vmatprep.subr.mxu0 %v147
    %1164 = vmatpush1.msra.mxu0 %v146
    %1165 = vmatprep.subr.mxu0 %v149
    %1166 = vmatpush1.msra.mxu0 %v148
    %1167 = vmatprep.subr.mxu0 0.0
    %1168 = vmatpush1.msra.mxu0 0.0
    %1169 = vmatprep.subr.mxu0 0.0
    %1170 = vmatpush1.msra.mxu0 0.0
    %1171 = vmatprep.subr.mxu0 0.0
    %1172 = vmatpush1.msra.mxu0 0.0
    %1173 = vmatprep.subr.mxu0 0.0
    %1174 = vmatpush1.msra.mxu0 0.0
    %1175 = vmatprep.subr.mxu0 0.0
    %1176 = vmatpush1.msra.mxu0 0.0
    %1177 = vmatprep.subr.mxu0 0.0
    %1178 = vmatpush1.msra.mxu0 0.0
    %1179 = vmatprep.subr.mxu0 0.0
    %1180 = vmatpush1.msra.mxu0 0.0
    %1181 = vmatprep.subr.mxu0 0.0
    %1182 = vmatpush1.msra.mxu0 0.0
    %1183 = vmatprep.subr.mxu0 0.0
    %1184 = vmatpush1.msra.mxu0 0.0
    %1185 = vmatprep.subr.mxu0 0.0
    %1186 = vmatpush1.msra.mxu0 0.0
    %1187 = vmatprep.subr.mxu0 0.0
    %1188 = vmatpush1.msra.mxu0 0.0
    %1189 = vmatprep.subr.mxu0 0.0
    %1190 = vmatpush1.msra.mxu0 0.0
    %1191 = vmatprep.subr.mxu0 0.0
    %1192 = vmatpush1.msra.mxu0 0.0
    %1193 = vmatprep.subr.mxu0 0.0
    %1194 = vmatpush1.msra.mxu0 0.0
    %1195 = vmatprep.subr.mxu0 0.0
    %1196 = vmatpush1.msra.mxu0 0.0
    %1197 = vmatprep.subr.mxu0 0.0
    %1198 = vmatpush1.msra.mxu0 0.0
    %1199 = vmatprep.subr.mxu0 0.0
    %1200 = vmatpush1.msra.mxu0 0.0
    %1201 = vmatprep.subr.mxu0 0.0
    %1202 = vmatpush1.msra.mxu0 0.0
    %1203 = vmatprep.subr.mxu0 0.0
    %1204 = vmatpush1.msra.mxu0 0.0
    %1205 = vmatprep.subr.mxu0 0.0
    %1206 = vmatpush1.msra.mxu0 0.0
    %1207 = vmatprep.subr.mxu0 0.0
    %1208 = vmatpush1.msra.mxu0 0.0
    %1209 = vmatprep.subr.mxu0 0.0
    %1210 = vmatpush1.msra.mxu0 0.0
    %1211 = vmatprep.subr.mxu0 0.0
    %1212 = vmatpush1.msra.mxu0 0.0
    %1213 = vmatprep.subr.mxu0 0.0
    %1214 = vmatpush1.msra.mxu0 0.0
    %1215 = vmatprep.mubr.f32.mxu0 0.0
    %1216 = vmatmul.mubr.f32.gmra.mrb[0].mxu0 %v1149
    %v1217 = vpop.f32.mrb[0].mxu0
    %v1218 = vadd.f32 0.0, %v1217
    %v1219 = vpop.f32.mrb[0].mxu0
    %1220 = vdwg.mxu0
    %v1221 = vadd.f32 %v1218, %v268
    %v1222 = vmul.f32 %v1221, %v158
    %v1223 = vtanh.pop %v1222
    %v1224 = vmul.f32 %v1223, %v158
    %v1225 = vadd.f32 %v1224, %v159
    %v1226 = vmul.f32 %v1225, %v1101
    %1228 = vrot.lane.b32.xlu0 %v1225, 64
    %v1229 = vpop.permute.xlu0 %1228
    %v1231 = vmul.f32 %v1225, %v1229
    %1233 = vrot.lane.b32.xlu0 %v1231, 32
    %v1234 = vpop.permute.xlu0 %1233
    %v1236 = vadd.f32 %v1226, %v1234
    %v1237 = vtanh.pop %v1236
    %1239 = vrot.lane.b32.xlu0 %v1237, 64
    %v1240 = vpop.permute.xlu0 %1239
    %v1242 = vmul.f32 %v1225, %v1240
    %vm1243 = vcmp.eq.s32.totalorder %v152, 7
    %v1244 = vsel %vm1243, 1, 0
    %1245 = vset.pattern.permute.xlu0 0
    %1246 = vperm.xlu0 %1245, %v1244
    %v1247 = vpop.permute.xlu0 %1246
    %vm1248 = vcmp.eq.s32.totalorder %v1247, 1
    %v1249 = vsel %vm1248, %v1242, %v1114
    %v1250 = vld [vmem:[%s6] sm:$0xff]
    %v1251 = vld [vmem:[%s6 + $0x8] sm:$0xff]
    %v1252 = vld [vmem:[%s6 + $0x10] sm:$0xff]
    %v1253 = vld [vmem:[%s6 + $0x18] sm:$0xff]
    %v1254 = vld [vmem:[%s7] sm:$0x1]
    %v1256 = vlaneseq
    %v1257 = vshrl.u32 %v1256, 7
    %v1258 = vsub.s32 0, %v1257
    %v1259 = vrot.slane %v1254, %v1258
    %1262 = vrot.lane.b32.xlu0 %v1249, 32
    %v1263 = vpop.permute.xlu0 %1262
    %v1264 = vsel %vm187, %v1263, 0
    %1266 = vmatprep.subr.mxu0 0.0
    %1267 = vmatpush1.msra.mxu0 %v1250
    %1268 = vmatprep.subr.mxu0 0.0
    %1269 = vmatpush1.msra.mxu0 %v1251
    %1270 = vmatprep.subr.mxu0 0.0
    %1271 = vmatpush1.msra.mxu0 %v1252
    %1272 = vmatprep.subr.mxu0 0.0
    %1273 = vmatpush1.msra.mxu0 %v1253
    %1274 = vmatprep.subr.mxu0 0.0
    %1275 = vmatpush1.msra.mxu0 0.0
    %1276 = vmatprep.subr.mxu0 0.0
    %1277 = vmatpush1.msra.mxu0 0.0
    %1278 = vmatprep.subr.mxu0 0.0
    %1279 = vmatpush1.msra.mxu0 0.0
    %1280 = vmatprep.subr.mxu0 0.0
    %1281 = vmatpush1.msra.mxu0 0.0
    %1282 = vmatprep.subr.mxu0 0.0
    %1283 = vmatpush1.msra.mxu0 0.0
    %1284 = vmatprep.subr.mxu0 0.0
    %1285 = vmatpush1.msra.mxu0 0.0
    %1286 = vmatprep.subr.mxu0 0.0
    %1287 = vmatpush1.msra.mxu0 0.0
    %1288 = vmatprep.subr.mxu0 0.0
    %1289 = vmatpush1.msra.mxu0 0.0
    %1290 = vmatprep.subr.mxu0 0.0
    %1291 = vmatpush1.msra.mxu0 0.0
    %1292 = vmatprep.subr.mxu0 0.0
    %1293 = vmatpush1.msra.mxu0 0.0
    %1294 = vmatprep.subr.mxu0 0.0
    %1295 = vmatpush1.msra.mxu0 0.0
    %1296 = vmatprep.subr.mxu0 0.0
    %1297 = vmatpush1.msra.mxu0 0.0
    %1298 = vmatprep.subr.mxu0 0.0
    %1299 = vmatpush1.msra.mxu0 0.0
    %1300 = vmatprep.subr.mxu0 0.0
    %1301 = vmatpush1.msra.mxu0 0.0
    %1302 = vmatprep.subr.mxu0 0.0
    %1303 = vmatpush1.msra.mxu0 0.0
    %1304 = vmatprep.subr.mxu0 0.0
    %1305 = vmatpush1.msra.mxu0 0.0
    %1306 = vmatprep.subr.mxu0 0.0
    %1307 = vmatpush1.msra.mxu0 0.0
    %1308 = vmatprep.subr.mxu0 0.0
    %1309 = vmatpush1.msra.mxu0 0.0
    %1310 = vmatprep.subr.mxu0 0.0
    %1311 = vmatpush1.msra.mxu0 0.0
    %1312 = vmatprep.subr.mxu0 0.0
    %1313 = vmatpush1.msra.mxu0 0.0
    %1314 = vmatprep.subr.mxu0 0.0
    %1315 = vmatpush1.msra.mxu0 0.0
    %1316 = vmatprep.subr.mxu0 0.0
    %1317 = vmatpush1.msra.mxu0 0.0
    %1318 = vmatprep.subr.mxu0 0.0
    %1319 = vmatpush1.msra.mxu0 0.0
    %1320 = vmatprep.subr.mxu0 0.0
    %1321 = vmatpush1.msra.mxu0 0.0
    %1322 = vmatprep.subr.mxu0 0.0
    %1323 = vmatpush1.msra.mxu0 0.0
    %1324 = vmatprep.subr.mxu0 0.0
    %1325 = vmatpush1.msra.mxu0 0.0
    %1326 = vmatprep.subr.mxu0 0.0
    %1327 = vmatpush1.msra.mxu0 0.0
    %1328 = vmatprep.subr.mxu0 0.0
    %1329 = vmatpush1.msra.mxu0 0.0
    %1330 = vmatprep.mubr.f32.mxu0 0.0
    %1331 = vmatmul.mubr.f32.gmra.mrb[0].mxu0 %v1264
    %v1332 = vpop.f32.mrb[0].mxu0
    %v1333 = vadd.f32 %v1259, %v1332
    %v1334 = vpop.f32.mrb[0].mxu0
    %1335 = vdwg.mxu0
    %1336 = vst [vmem:[#allocation7] sm:$0xff] %v1333
    // Predicated region
    $region42: #{tpu_custom_call.1} parent=1 // pred_check
      _
    $region43: #{tpu_custom_call.1} parent=1 // pred_check_branch
      %1338 = sbr.rel (0) target = $region45
    $region44: #{tpu_custom_call.1} parent=1 // pred_region
      %s1340 = ssub.s32 128, 128
      %1341 = vsyncadd [#allocation6], %s1340
      %s1343 = sshll.u32 [#allocation7], 4
      %s1344 = int_to_ptr.vmem [resolvable:$true] %s1343
      %1346 = dma.vmem_to_hbm [thread:$0]  %s1344, 128, %s9, [#allocation6]
    $region45: #{tpu_custom_call.1} parent=1 // pred_fallthru
      _
    // Predicated region
    $region46: #{tpu_custom_call.1} parent=1 // pred_check
      _
    $region47: #{tpu_custom_call.1} parent=1 // pred_check_branch
      %1348 = sbr.rel (0) target = $region49
    $region48: #{tpu_custom_call.1} parent=1 // pred_region
      %1349 = dma.done [#allocation6], 128
    $region49: #{tpu_custom_call.1} parent=1 // pred_fallthru
      _
    %1350 = vsyncpa [#allocation5], 1
    %1351 = vsyncpa [#allocation6], 1

</llo_original>
